<compile_context>
chip_gen: v6e
topology: v6e:2x2x1
jax: 0.10.0
libtpu: 0.0.40
codegen_flags: <defaults>
</compile_context>

<pallas_src>
import functools

import jax
import jax.numpy as jnp
from jax.experimental import pallas as pl
from jax.experimental.pallas import tpu as pltpu


# ----------------------------------------------------------------------------- helpers
def _layernorm(z, gamma, beta, eps=1e-5):
    # z: (..., D); gamma/beta broadcastable (1, D); normalize over last axis (f32).
    mu = jnp.mean(z, axis=-1, keepdims=True)
    var = jnp.mean(jnp.square(z - mu), axis=-1, keepdims=True)
    return (z - mu) * jax.lax.rsqrt(var + eps) * gamma + beta


_SQRT_HALF = 0.7071067811865476


def _erf_poly(x):
    # Abramowitz & Stegun 7.1.26 rational approximation of erf, |err| <= 1.5e-7.
    # Uses only abs/where/exp/poly so it lowers cleanly in Mosaic.
    p = 0.3275911
    a1, a2, a3, a4, a5 = (0.254829592, -0.284496736, 1.421413741,
                          -1.453152027, 1.061405429)
    sgn = jnp.where(x >= 0.0, 1.0, -1.0)
    ax = jnp.abs(x)
    t = 1.0 / (1.0 + p * ax)
    poly = ((((a5 * t + a4) * t + a3) * t + a2) * t + a1) * t
    return sgn * (1.0 - poly * jnp.exp(-ax * ax))


def _gelu(z, *, tanh_approx=False):
    if tanh_approx:
        # tanh-GELU: transcendental goes to the EUP slot (v6e/v7x perf option,
        # slightly different numerics than torch's default erf-GELU).
        return jax.nn.gelu(z, approximate=True)
    # erf-GELU (matches torch.nn.GELU() default to ~1e-7).
    return 0.5 * z * (1.0 + _erf_poly(z * _SQRT_HALF))


def _vmem_capacity_bytes():
    try:
        info = pltpu.get_tpu_info()
        cap = int(getattr(info, "vmem_capacity_bytes", 0))
        if cap > 0:
            return cap
    except Exception:
        pass
    return 64 * 2 ** 20  # conservative default: v7x has 64 MiB per TensorCore


# ----------------------------------------------------------------------------- kernel
def mixer_block_kernel(
    x_ref,      # (TB, P, D)   activations (f32 or bf16)
    ln_ref,     # (6, D) f32   [tln_g, tln_b, cln_g, cln_b, cb1, cb2]
    tbias_ref,  # (P, 2) f32   [:, 0] = token bias1, [:, 1] = token bias2
    tw_ref,     # (2, P, P)    token_mixer weights (as stored by PyTorch)
    cw_ref,     # (2, D, D)    channel_mixer weights, pre-transposed to (in, out)
    o_ref,      # (TB, P, D)
    *,
    matmul_dtype,
    tanh_gelu,
):
    f32 = jnp.float32
    md = matmul_dtype
    tb_, p_, d_ = x_ref.shape

    ln = ln_ref[...].astype(f32)                 # (6, D)
    tln_g, tln_b = ln[0:1], ln[1:2]
    cln_g, cln_b = ln[2:3], ln[3:4]
    cb1, cb2 = ln[4:5], ln[5:6]
    tb1 = tbias_ref[:, 0:1].astype(f32)          # (P, 1): per-patch, broadcast over lanes
    tb2 = tbias_ref[:, 1:2].astype(f32)

    x2 = x_ref[...].reshape(tb_ * p_, d_).astype(f32)        # (TB*P, D), lane = D

    # ---- token-mixing branch: Linear over the patch axis -------------------------
    t2 = _layernorm(x2, tln_g, tln_b)                         # (TB*P, D) f32
    # Pack to (P, TB*D): lane-aligned concat of the per-batch (P, D) blocks so the
    # token mix is a single wide 2-D matmul instead of TB tiny K=P matmuls.
    t_pd = jnp.concatenate(
        [t2[b * p_:(b + 1) * p_, :] for b in range(tb_)], axis=1)        # (P, TB*D)
    h = jnp.dot(tw_ref[0].astype(md), t_pd.astype(md),
                preferred_element_type=f32) + tb1                         # (P, TB*D)
    h = _gelu(h, tanh_approx=tanh_gelu)
    tok = jnp.dot(tw_ref[1].astype(md), h.astype(md),
                  preferred_element_type=f32) + tb2                       # (P, TB*D)
    # Unpack back to (TB*P, D) rows; first residual.
    tok_rows = jnp.concatenate(
        [tok[:, b * d_:(b + 1) * d_] for b in range(tb_)], axis=0)        # (TB*P, D)
    u2 = x2 + tok_rows

    # ---- channel-mixing branch: Linear over the feature axis ---------------------
    c = _layernorm(u2, cln_g, cln_b)
    h2 = jnp.dot(c.astype(md), cw_ref[0].astype(md),
                 preferred_element_type=f32) + cb1
    h2 = _gelu(h2, tanh_approx=tanh_gelu)
    ch = jnp.dot(h2.astype(md), cw_ref[1].astype(md),
                 preferred_element_type=f32) + cb2

    o_ref[...] = (u2 + ch).reshape(tb_, p_, d_).astype(o_ref.dtype)      # 2nd residual


# ----------------------------------------------------------------------------- wrapper
def pick_batch_tile(B, P, D, *, x_itemsize=4, vmem_budget_bytes=None,
                    min_steps=4, target_m=128):
    """Pick TB: fits VMEM, leaves >= min_steps grid steps (pipelining + >=2 steps
    per v7x core), and pushes the channel-mix M = TB*P toward >= target_m."""
    if vmem_budget_bytes is None:
        vmem_budget_bytes = (3 * _vmem_capacity_bytes()) // 4

    def fits(t):
        live = 12 * t * P * D * 4          # ~12 live f32 (TB,P,D) intermediates
        io = 4 * t * P * D * x_itemsize    # double-buffered in + out tiles
        return live + io <= vmem_budget_bytes

    divs = [t for t in range(1, B + 1) if B % t == 0 and fits(t)]
    if not divs:
        return 1
    for steps in (min_steps, 2, 1):
        cands = [t for t in divs if B // t >= steps]
        if not cands:
            continue
        big = [t for t in cands if t * P >= target_m]
        return min(big) if big else max(cands)
    return max(divs)


def pack_params(params, *, matmul_dtype=jnp.float32):
    """One-time packing (transposes/stacks hoisted out of the per-call path).
    Weights are TB-agnostic: no re-packing when the batch tile changes."""
    f32 = jnp.float32
    ln = jnp.stack([params["tln_g"], params["tln_b"],
                    params["cln_g"], params["cln_b"],
                    params["cb1"], params["cb2"]], axis=0).astype(f32)        # (6, D)
    tbias = jnp.stack([params["tb1"], params["tb2"]], axis=1).astype(f32)     # (P, 2)
    tw = jnp.stack([params["tw1"], params["tw2"]], axis=0).astype(matmul_dtype)         # (2,P,P)
    cw = jnp.stack([params["cw1"].T, params["cw2"].T], axis=0).astype(matmul_dtype)     # (2,D,D)
    return {"ln": ln, "tbias": tbias, "tw": tw, "cw": cw}


def mixer_block(x, pk, *, tb, matmul_dtype=jnp.float32, tanh_gelu=False):
    """x: (B, P, D) f32 or bf16; pk: output of pack_params (same matmul_dtype)."""
    B, P, D = x.shape
    assert B % tb == 0, "batch tile must divide the batch"
    grid = (B // tb,)
    ln, tbias, tw, cw = pk["ln"], pk["tbias"], pk["tw"], pk["cw"]

    def const_spec(shape):
        zeros = (0,) * len(shape)
        return pl.BlockSpec(shape, lambda b, _z=zeros: _z)

    in_specs = [
        pl.BlockSpec((tb, P, D), lambda b: (b, 0, 0)),
        const_spec(ln.shape),
        const_spec(tbias.shape),
        const_spec(tw.shape),
        const_spec(cw.shape),
    ]
    out_specs = pl.BlockSpec((tb, P, D), lambda b: (b, 0, 0))

    wbytes = int(sum(a.size * a.dtype.itemsize for a in (ln, tbias, tw, cw)))
    cost = pl.CostEstimate(
        flops=int(4 * B * P * D * (P + D)),          # 2 token + 2 channel matmuls
        transcendentals=int(2 * B * P * D),          # one exp per GELU element
        bytes_accessed=int(2 * B * P * D * x.dtype.itemsize + wbytes),
    )

    # Generation-aware VMEM budget (v7x = 64 MiB/TC vs 128 MiB on v5e/v6e).
    cap = _vmem_capacity_bytes()
    tile_io = tb * P * D * x.dtype.itemsize
    tile_f32 = tb * P * D * 4
    need = 4 * tile_io + 2 * wbytes + 12 * tile_f32
    vmem_limit = int(min((4 * cap) // 5, max(16 * 2 ** 20, 2 * need)))

    kernel = functools.partial(mixer_block_kernel,
                               matmul_dtype=matmul_dtype, tanh_gelu=tanh_gelu)
    return pl.pallas_call(
        kernel,
        out_shape=jax.ShapeDtypeStruct((B, P, D), x.dtype),
        grid_spec=pltpu.PrefetchScalarGridSpec(
            num_scalar_prefetch=0,
            grid=grid,
            in_specs=in_specs,
            out_specs=out_specs,
        ),
        compiler_params=pltpu.CompilerParams(
            dimension_semantics=("parallel",),
            vmem_limit_bytes=vmem_limit,
        ),
        cost_estimate=cost,
    )(x, ln, tbias, tw, cw)


# ----------------------------------------------------------------------------- params / reference
def init_params(key, dim, num_patches):
    """Deterministic synthetic parameters matching the PyTorch module's shapes."""
    ks = jax.random.split(key, 8)
    s = 0.05
    return {
        "tln_g": jnp.ones((dim,), jnp.float32) + s * jax.random.normal(ks[0], (dim,)),
        "tln_b": s * jax.random.normal(ks[1], (dim,)),
        "tw1": s * jax.random.normal(ks[2], (num_patches, num_patches)),
        "tb1": s * jax.random.normal(ks[3], (num_patches,)),
        "tw2": s * jax.random.normal(ks[4], (num_patches, num_patches)),
        "tb2": s * jax.random.normal(ks[5], (num_patches,)),
        "cln_g": jnp.ones((dim,), jnp.float32) + s * jax.random.normal(ks[6], (dim,)),
        "cln_b": s * jax.random.normal(ks[7], (dim,)),
        "cw1": s * jax.random.normal(jax.random.fold_in(key, 100), (dim, dim)),
        "cb1": s * jax.random.normal(jax.random.fold_in(key, 101), (dim,)),
        "cw2": s * jax.random.normal(jax.random.fold_in(key, 102), (dim, dim)),
        "cb2": s * jax.random.normal(jax.random.fold_in(key, 103), (dim,)),
    }


def mixer_block_ref(x, p):
    """Pure-JAX reference mirroring the PyTorch forward exactly."""
    def ln(z, g, b, eps=1e-5):
        mu = jnp.mean(z, axis=-1, keepdims=True)
        var = jnp.mean((z - mu) ** 2, axis=-1, keepdims=True)
        return (z - mu) / jnp.sqrt(var + eps) * g + b

    gelu = functools.partial(jax.nn.gelu, approximate=False)

    t = ln(x, p["tln_g"], p["tln_b"]).transpose(0, 2, 1)            # (B, D, P)
    t = gelu(t @ p["tw1"].T + p["tb1"]) @ p["tw2"].T + p["tb2"]
    x = x + t.transpose(0, 2, 1)

    c = ln(x, p["cln_g"], p["cln_b"])
    c = gelu(c @ p["cw1"].T + p["cb1"]) @ p["cw2"].T + p["cb2"]
    return x + c


# ----------------------------------------------------------------------------- main
if __name__ == "__main__":
    # Correctness-sized demo: D is lane-dense (128-multiple), P a multiple of 8,
    # B large enough that TB*P reaches 128 while keeping 4 grid steps (2 per v7x
    # core).  NOTE: benchmark with model-realistic D (>= 512); at D=128 the
    # kernel is VPU-bound, so perf conclusions from this shape do not transfer.
    B, P, D = 32, 16, 128
    key = jax.random.PRNGKey(0)
    kx, kp = jax.random.split(key)
    x = jax.random.normal(kx, (B, P, D), dtype=jnp.float32)
    params = init_params(kp, dim=D, num_patches=P)
    ref = mixer_block_ref(x, params)

    tb = pick_batch_tile(B, P, D)          # -> 8: grid=(4,), channel-mix M = 128

    # 1) f32 matmul operands (near bit-faithful vs the pure-JAX reference).
    pk32 = pack_params(params, matmul_dtype=jnp.float32)
    out32 = jax.block_until_ready(mixer_block(x, pk32, tb=tb, matmul_dtype=jnp.float32))
    assert out32.shape == (B, P, D)
    assert jnp.allclose(out32, ref, atol=1e-3, rtol=1e-3), "f32 kernel mismatch vs reference"

    # 2) bf16 matmul operands + bf16 activation I/O (recommended on v5e/v6e/v7x);
    #    f32 accumulation and f32 LayerNorm/GELU remain inside the kernel.
    pkbf = pack_params(params, matmul_dtype=jnp.bfloat16)
    xbf = x.astype(jnp.bfloat16)
    outbf = jax.block_until_ready(mixer_block(xbf, pkbf, tb=tb, matmul_dtype=jnp.bfloat16))
    assert outbf.shape == (B, P, D)
    assert jnp.allclose(outbf.astype(jnp.float32), ref, atol=6e-2, rtol=6e-2), \
        "bf16 kernel mismatch vs reference"

    print("KERNEL_OK")
</pallas_src>

<mosaic_0001>
module attributes {stable_mosaic.version = 11 : i64} {
  func.func @mixer_block_kernel(%arg0: i32, %arg1: memref<8x16x128xf32, #tpu.memory_space<vmem>>, %arg2: memref<6x128xf32, #tpu.memory_space<vmem>>, %arg3: memref<16x2xf32, #tpu.memory_space<vmem>>, %arg4: memref<2x16x16xf32, #tpu.memory_space<vmem>>, %arg5: memref<2x128x128xf32, #tpu.memory_space<vmem>>, %arg6: memref<8x16x128xf32, #tpu.memory_space<vmem>>) attributes {dimension_semantics = [#tpu.dimension_semantics<parallel>], iteration_bounds = array<i64: 4>, scalar_prefetch = 0 : i64, scratch_operands = 0 : i64, tpu.core_type = #tpu.core_type<tc>, window_params = [{transform_indices = @transform_0, window_bounds = array<i64: 8, 16, 128>}, {pipeline_mode = #tpu.pipeline_mode<synchronous>, transform_indices = @transform_1, window_bounds = array<i64: 6, 128>}, {pipeline_mode = #tpu.pipeline_mode<synchronous>, transform_indices = @transform_2, window_bounds = array<i64: 16, 2>}, {pipeline_mode = #tpu.pipeline_mode<synchronous>, transform_indices = @transform_3, window_bounds = array<i64: 2, 16, 16>}, {pipeline_mode = #tpu.pipeline_mode<synchronous>, transform_indices = @transform_4, window_bounds = array<i64: 2, 128, 128>}, {transform_indices = @transform_5, window_bounds = array<i64: 8, 16, 128>}]} {
    %c0 = arith.constant 0 : index
    %c0_0 = arith.constant 0 : index
    %0 = vector.load %arg2[%c0, %c0_0] : memref<6x128xf32, #tpu.memory_space<vmem>>, vector<6x128xf32>
    %1 = vector.extract_strided_slice %0 {offsets = [0, 0], sizes = [1, 128], strides = [1, 1]} : vector<6x128xf32> to vector<1x128xf32>
    %2 = vector.extract_strided_slice %0 {offsets = [1, 0], sizes = [1, 128], strides = [1, 1]} : vector<6x128xf32> to vector<1x128xf32>
    %3 = vector.extract_strided_slice %0 {offsets = [2, 0], sizes = [1, 128], strides = [1, 1]} : vector<6x128xf32> to vector<1x128xf32>
    %4 = vector.extract_strided_slice %0 {offsets = [3, 0], sizes = [1, 128], strides = [1, 1]} : vector<6x128xf32> to vector<1x128xf32>
    %5 = vector.extract_strided_slice %0 {offsets = [4, 0], sizes = [1, 128], strides = [1, 1]} : vector<6x128xf32> to vector<1x128xf32>
    %6 = vector.extract_strided_slice %0 {offsets = [5, 0], sizes = [1, 128], strides = [1, 1]} : vector<6x128xf32> to vector<1x128xf32>
    %c0_1 = arith.constant 0 : index
    %c0_2 = arith.constant 0 : index
    %7 = vector.load %arg3[%c0_1, %c0_2] : memref<16x2xf32, #tpu.memory_space<vmem>>, vector<16x1xf32>
    %c0_3 = arith.constant 0 : index
    %c1 = arith.constant 1 : index
    %8 = vector.load %arg3[%c0_3, %c1] : memref<16x2xf32, #tpu.memory_space<vmem>>, vector<16x1xf32>
    %c0_4 = arith.constant 0 : index
    %c0_5 = arith.constant 0 : index
    %c0_6 = arith.constant 0 : index
    %9 = vector.load %arg1[%c0_4, %c0_5, %c0_6] : memref<8x16x128xf32, #tpu.memory_space<vmem>>, vector<8x16x128xf32>
    %10 = vector.shape_cast %9 : vector<8x16x128xf32> to vector<128x128xf32>
    %cst = arith.constant dense<0.000000e+00> : vector<128xf32>
    %11 = vector.multi_reduction <add>, %10, %cst [1] : vector<128x128xf32> to vector<128xf32>
    %12 = vector.shape_cast %11 : vector<128xf32> to vector<128x1xf32>
    %cst_7 = arith.constant 1.280000e+02 : f32
    %13 = vector.broadcast %cst_7 : f32 to vector<128x1xf32>
    %14 = arith.divf %12, %13 : vector<128x1xf32>
    %15 = vector.broadcast %14 : vector<128x1xf32> to vector<128x128xf32>
    %16 = arith.subf %10, %15 : vector<128x128xf32>
    %17 = arith.mulf %16, %16 : vector<128x128xf32>
    %cst_8 = arith.constant dense<0.000000e+00> : vector<128xf32>
    %18 = vector.multi_reduction <add>, %17, %cst_8 [1] : vector<128x128xf32> to vector<128xf32>
    %19 = vector.shape_cast %18 : vector<128xf32> to vector<128x1xf32>
    %cst_9 = arith.constant 1.280000e+02 : f32
    %20 = vector.broadcast %cst_9 : f32 to vector<128x1xf32>
    %21 = arith.divf %19, %20 : vector<128x1xf32>
    %22 = vector.broadcast %14 : vector<128x1xf32> to vector<128x128xf32>
    %23 = arith.subf %10, %22 : vector<128x128xf32>
    %cst_10 = arith.constant 9.99999974E-6 : f32
    %24 = vector.broadcast %cst_10 : f32 to vector<128x1xf32>
    %25 = arith.addf %21, %24 : vector<128x1xf32>
    %26 = math.rsqrt %25 : vector<128x1xf32>
    %27 = vector.broadcast %26 : vector<128x1xf32> to vector<128x128xf32>
    %28 = arith.mulf %23, %27 : vector<128x128xf32>
    %29 = vector.broadcast %1 : vector<1x128xf32> to vector<128x128xf32>
    %30 = arith.mulf %28, %29 : vector<128x128xf32>
    %31 = vector.broadcast %2 : vector<1x128xf32> to vector<128x128xf32>
    %32 = arith.addf %30, %31 : vector<128x128xf32>
    %33 = vector.extract_strided_slice %32 {offsets = [0, 0], sizes = [16, 128], strides = [1, 1]} : vector<128x128xf32> to vector<16x128xf32>
    %34 = vector.extract_strided_slice %32 {offsets = [16, 0], sizes = [16, 128], strides = [1, 1]} : vector<128x128xf32> to vector<16x128xf32>
    %35 = vector.extract_strided_slice %32 {offsets = [32, 0], sizes = [16, 128], strides = [1, 1]} : vector<128x128xf32> to vector<16x128xf32>
    %36 = vector.extract_strided_slice %32 {offsets = [48, 0], sizes = [16, 128], strides = [1, 1]} : vector<128x128xf32> to vector<16x128xf32>
    %37 = vector.extract_strided_slice %32 {offsets = [64, 0], sizes = [16, 128], strides = [1, 1]} : vector<128x128xf32> to vector<16x128xf32>
    %38 = vector.extract_strided_slice %32 {offsets = [80, 0], sizes = [16, 128], strides = [1, 1]} : vector<128x128xf32> to vector<16x128xf32>
    %39 = vector.extract_strided_slice %32 {offsets = [96, 0], sizes = [16, 128], strides = [1, 1]} : vector<128x128xf32> to vector<16x128xf32>
    %40 = vector.extract_strided_slice %32 {offsets = [112, 0], sizes = [16, 128], strides = [1, 1]} : vector<128x128xf32> to vector<16x128xf32>
    %41 = tpu.concatenate %33, %34, %35, %36, %37, %38, %39, %40 in 1 : vector<16x128xf32>, vector<16x128xf32>, vector<16x128xf32>, vector<16x128xf32>, vector<16x128xf32>, vector<16x128xf32>, vector<16x128xf32>, vector<16x128xf32> -> vector<16x1024xf32>
    %c0_11 = arith.constant 0 : index
    %c0_12 = arith.constant 0 : index
    %c0_13 = arith.constant 0 : index
    %42 = vector.load %arg4[%c0_11, %c0_12, %c0_13] : memref<2x16x16xf32, #tpu.memory_space<vmem>>, vector<1x16x16xf32>
    %43 = vector.shape_cast %42 : vector<1x16x16xf32> to vector<16x16xf32>
    %cst_14 = arith.constant dense<0.000000e+00> : vector<16x1024xf32>
    %44 = tpu.matmul %43, %41, %cst_14 {dimension_numbers = #tpu.dot_dimension_numbers<[1], [0], [0], [1], [0, 0, 1, 1], [], []>} : vector<16x16xf32>, vector<16x1024xf32>, vector<16x1024xf32> -> vector<16x1024xf32>
    %45 = vector.broadcast %7 : vector<16x1xf32> to vector<16x1024xf32>
    %46 = arith.addf %44, %45 : vector<16x1024xf32>
    %cst_15 = arith.constant 5.000000e-01 : f32
    %47 = vector.broadcast %cst_15 : f32 to vector<16x1024xf32>
    %48 = arith.mulf %47, %46 : vector<16x1024xf32>
    %cst_16 = arith.constant 0.707106769 : f32
    %49 = vector.broadcast %cst_16 : f32 to vector<16x1024xf32>
    %50 = arith.mulf %46, %49 : vector<16x1024xf32>
    %cst_17 = arith.constant 0.000000e+00 : f32
    %51 = vector.broadcast %cst_17 : f32 to vector<16x1024xf32>
    %52 = arith.cmpf oge, %50, %51 : vector<16x1024xf32>
    %cst_18 = arith.constant 1.000000e+00 : f32
    %cst_19 = arith.constant -1.000000e+00 : f32
    %53 = vector.broadcast %cst_18 : f32 to vector<16x1024xf32>
    %54 = vector.broadcast %cst_19 : f32 to vector<16x1024xf32>
    %55 = arith.select %52, %53, %54 : vector<16x1024xi1>, vector<16x1024xf32>
    %56 = math.absf %50 : vector<16x1024xf32>
    %cst_20 = arith.constant 0.327591091 : f32
    %57 = vector.broadcast %cst_20 : f32 to vector<16x1024xf32>
    %58 = arith.mulf %57, %56 : vector<16x1024xf32>
    %cst_21 = arith.constant 1.000000e+00 : f32
    %59 = vector.broadcast %cst_21 : f32 to vector<16x1024xf32>
    %60 = arith.addf %59, %58 : vector<16x1024xf32>
    %cst_22 = arith.constant 1.000000e+00 : f32
    %61 = vector.broadcast %cst_22 : f32 to vector<16x1024xf32>
    %62 = arith.divf %61, %60 : vector<16x1024xf32>
    %cst_23 = arith.constant 1.06140542 : f32
    %63 = vector.broadcast %cst_23 : f32 to vector<16x1024xf32>
    %64 = arith.mulf %63, %62 : vector<16x1024xf32>
    %cst_24 = arith.constant -1.45315206 : f32
    %65 = vector.broadcast %cst_24 : f32 to vector<16x1024xf32>
    %66 = arith.addf %64, %65 : vector<16x1024xf32>
    %67 = arith.mulf %66, %62 : vector<16x1024xf32>
    %cst_25 = arith.constant 1.42141378 : f32
    %68 = vector.broadcast %cst_25 : f32 to vector<16x1024xf32>
    %69 = arith.addf %67, %68 : vector<16x1024xf32>
    %70 = arith.mulf %69, %62 : vector<16x1024xf32>
    %cst_26 = arith.constant -0.284496725 : f32
    %71 = vector.broadcast %cst_26 : f32 to vector<16x1024xf32>
    %72 = arith.addf %70, %71 : vector<16x1024xf32>
    %73 = arith.mulf %72, %62 : vector<16x1024xf32>
    %cst_27 = arith.constant 0.254829586 : f32
    %74 = vector.broadcast %cst_27 : f32 to vector<16x1024xf32>
    %75 = arith.addf %73, %74 : vector<16x1024xf32>
    %76 = arith.mulf %75, %62 : vector<16x1024xf32>
    %cst_28 = arith.constant 0.000000e+00 : f32
    %77 = vector.broadcast %cst_28 : f32 to vector<16x1024xf32>
    %78 = arith.subf %77, %56 : vector<16x1024xf32>
    %79 = arith.mulf %78, %56 : vector<16x1024xf32>
    %80 = math.exp %79 : vector<16x1024xf32>
    %81 = arith.mulf %76, %80 : vector<16x1024xf32>
    %cst_29 = arith.constant 1.000000e+00 : f32
    %82 = vector.broadcast %cst_29 : f32 to vector<16x1024xf32>
    %83 = arith.subf %82, %81 : vector<16x1024xf32>
    %84 = arith.mulf %55, %83 : vector<16x1024xf32>
    %cst_30 = arith.constant 1.000000e+00 : f32
    %85 = vector.broadcast %cst_30 : f32 to vector<16x1024xf32>
    %86 = arith.addf %85, %84 : vector<16x1024xf32>
    %87 = arith.mulf %48, %86 : vector<16x1024xf32>
    %c1_31 = arith.constant 1 : index
    %c0_32 = arith.constant 0 : index
    %c0_33 = arith.constant 0 : index
    %88 = vector.load %arg4[%c1_31, %c0_32, %c0_33] : memref<2x16x16xf32, #tpu.memory_space<vmem>>, vector<1x16x16xf32>
    %89 = vector.shape_cast %88 : vector<1x16x16xf32> to vector<16x16xf32>
    %cst_34 = arith.constant dense<0.000000e+00> : vector<16x1024xf32>
    %90 = tpu.matmul %89, %87, %cst_34 {dimension_numbers = #tpu.dot_dimension_numbers<[1], [0], [0], [1], [0, 0, 1, 1], [], []>} : vector<16x16xf32>, vector<16x1024xf32>, vector<16x1024xf32> -> vector<16x1024xf32>
    %91 = vector.broadcast %8 : vector<16x1xf32> to vector<16x1024xf32>
    %92 = arith.addf %90, %91 : vector<16x1024xf32>
    %93 = vector.extract_strided_slice %92 {offsets = [0, 0], sizes = [16, 128], strides = [1, 1]} : vector<16x1024xf32> to vector<16x128xf32>
    %94 = vector.extract_strided_slice %92 {offsets = [0, 128], sizes = [16, 128], strides = [1, 1]} : vector<16x1024xf32> to vector<16x128xf32>
    %95 = vector.extract_strided_slice %92 {offsets = [0, 256], sizes = [16, 128], strides = [1, 1]} : vector<16x1024xf32> to vector<16x128xf32>
    %96 = vector.extract_strided_slice %92 {offsets = [0, 384], sizes = [16, 128], strides = [1, 1]} : vector<16x1024xf32> to vector<16x128xf32>
    %97 = vector.extract_strided_slice %92 {offsets = [0, 512], sizes = [16, 128], strides = [1, 1]} : vector<16x1024xf32> to vector<16x128xf32>
    %98 = vector.extract_strided_slice %92 {offsets = [0, 640], sizes = [16, 128], strides = [1, 1]} : vector<16x1024xf32> to vector<16x128xf32>
    %99 = vector.extract_strided_slice %92 {offsets = [0, 768], sizes = [16, 128], strides = [1, 1]} : vector<16x1024xf32> to vector<16x128xf32>
    %100 = vector.extract_strided_slice %92 {offsets = [0, 896], sizes = [16, 128], strides = [1, 1]} : vector<16x1024xf32> to vector<16x128xf32>
    %101 = tpu.concatenate %93, %94, %95, %96, %97, %98, %99, %100 in 0 : vector<16x128xf32>, vector<16x128xf32>, vector<16x128xf32>, vector<16x128xf32>, vector<16x128xf32>, vector<16x128xf32>, vector<16x128xf32>, vector<16x128xf32> -> vector<128x128xf32>
    %102 = arith.addf %10, %101 : vector<128x128xf32>
    %cst_35 = arith.constant dense<0.000000e+00> : vector<128xf32>
    %103 = vector.multi_reduction <add>, %102, %cst_35 [1] : vector<128x128xf32> to vector<128xf32>
    %104 = vector.shape_cast %103 : vector<128xf32> to vector<128x1xf32>
    %cst_36 = arith.constant 1.280000e+02 : f32
    %105 = vector.broadcast %cst_36 : f32 to vector<128x1xf32>
    %106 = arith.divf %104, %105 : vector<128x1xf32>
    %107 = vector.broadcast %106 : vector<128x1xf32> to vector<128x128xf32>
    %108 = arith.subf %102, %107 : vector<128x128xf32>
    %109 = arith.mulf %108, %108 : vector<128x128xf32>
    %cst_37 = arith.constant dense<0.000000e+00> : vector<128xf32>
    %110 = vector.multi_reduction <add>, %109, %cst_37 [1] : vector<128x128xf32> to vector<128xf32>
    %111 = vector.shape_cast %110 : vector<128xf32> to vector<128x1xf32>
    %cst_38 = arith.constant 1.280000e+02 : f32
    %112 = vector.broadcast %cst_38 : f32 to vector<128x1xf32>
    %113 = arith.divf %111, %112 : vector<128x1xf32>
    %114 = vector.broadcast %106 : vector<128x1xf32> to vector<128x128xf32>
    %115 = arith.subf %102, %114 : vector<128x128xf32>
    %cst_39 = arith.constant 9.99999974E-6 : f32
    %116 = vector.broadcast %cst_39 : f32 to vector<128x1xf32>
    %117 = arith.addf %113, %116 : vector<128x1xf32>
    %118 = math.rsqrt %117 : vector<128x1xf32>
    %119 = vector.broadcast %118 : vector<128x1xf32> to vector<128x128xf32>
    %120 = arith.mulf %115, %119 : vector<128x128xf32>
    %121 = vector.broadcast %3 : vector<1x128xf32> to vector<128x128xf32>
    %122 = arith.mulf %120, %121 : vector<128x128xf32>
    %123 = vector.broadcast %4 : vector<1x128xf32> to vector<128x128xf32>
    %124 = arith.addf %122, %123 : vector<128x128xf32>
    %c0_40 = arith.constant 0 : index
    %c0_41 = arith.constant 0 : index
    %c0_42 = arith.constant 0 : index
    %125 = vector.load %arg5[%c0_40, %c0_41, %c0_42] : memref<2x128x128xf32, #tpu.memory_space<vmem>>, vector<1x128x128xf32>
    %126 = vector.shape_cast %125 : vector<1x128x128xf32> to vector<128x128xf32>
    %cst_43 = arith.constant dense<0.000000e+00> : vector<128x128xf32>
    %127 = tpu.matmul %124, %126, %cst_43 {dimension_numbers = #tpu.dot_dimension_numbers<[1], [0], [0], [1], [0, 0, 1, 1], [], []>} : vector<128x128xf32>, vector<128x128xf32>, vector<128x128xf32> -> vector<128x128xf32>
    %128 = vector.broadcast %5 : vector<1x128xf32> to vector<128x128xf32>
    %129 = arith.addf %127, %128 : vector<128x128xf32>
    %cst_44 = arith.constant 5.000000e-01 : f32
    %130 = vector.broadcast %cst_44 : f32 to vector<128x128xf32>
    %131 = arith.mulf %130, %129 : vector<128x128xf32>
    %cst_45 = arith.constant 0.707106769 : f32
    %132 = vector.broadcast %cst_45 : f32 to vector<128x128xf32>
    %133 = arith.mulf %129, %132 : vector<128x128xf32>
    %cst_46 = arith.constant 0.000000e+00 : f32
    %134 = vector.broadcast %cst_46 : f32 to vector<128x128xf32>
    %135 = arith.cmpf oge, %133, %134 : vector<128x128xf32>
    %cst_47 = arith.constant 1.000000e+00 : f32
    %cst_48 = arith.constant -1.000000e+00 : f32
    %136 = vector.broadcast %cst_47 : f32 to vector<128x128xf32>
    %137 = vector.broadcast %cst_48 : f32 to vector<128x128xf32>
    %138 = arith.select %135, %136, %137 : vector<128x128xi1>, vector<128x128xf32>
    %139 = math.absf %133 : vector<128x128xf32>
    %cst_49 = arith.constant 0.327591091 : f32
    %140 = vector.broadcast %cst_49 : f32 to vector<128x128xf32>
    %141 = arith.mulf %140, %139 : vector<128x128xf32>
    %cst_50 = arith.constant 1.000000e+00 : f32
    %142 = vector.broadcast %cst_50 : f32 to vector<128x128xf32>
    %143 = arith.addf %142, %141 : vector<128x128xf32>
    %cst_51 = arith.constant 1.000000e+00 : f32
    %144 = vector.broadcast %cst_51 : f32 to vector<128x128xf32>
    %145 = arith.divf %144, %143 : vector<128x128xf32>
    %cst_52 = arith.constant 1.06140542 : f32
    %146 = vector.broadcast %cst_52 : f32 to vector<128x128xf32>
    %147 = arith.mulf %146, %145 : vector<128x128xf32>
    %cst_53 = arith.constant -1.45315206 : f32
    %148 = vector.broadcast %cst_53 : f32 to vector<128x128xf32>
    %149 = arith.addf %147, %148 : vector<128x128xf32>
    %150 = arith.mulf %149, %145 : vector<128x128xf32>
    %cst_54 = arith.constant 1.42141378 : f32
    %151 = vector.broadcast %cst_54 : f32 to vector<128x128xf32>
    %152 = arith.addf %150, %151 : vector<128x128xf32>
    %153 = arith.mulf %152, %145 : vector<128x128xf32>
    %cst_55 = arith.constant -0.284496725 : f32
    %154 = vector.broadcast %cst_55 : f32 to vector<128x128xf32>
    %155 = arith.addf %153, %154 : vector<128x128xf32>
    %156 = arith.mulf %155, %145 : vector<128x128xf32>
    %cst_56 = arith.constant 0.254829586 : f32
    %157 = vector.broadcast %cst_56 : f32 to vector<128x128xf32>
    %158 = arith.addf %156, %157 : vector<128x128xf32>
    %159 = arith.mulf %158, %145 : vector<128x128xf32>
    %cst_57 = arith.constant 0.000000e+00 : f32
    %160 = vector.broadcast %cst_57 : f32 to vector<128x128xf32>
    %161 = arith.subf %160, %139 : vector<128x128xf32>
    %162 = arith.mulf %161, %139 : vector<128x128xf32>
    %163 = math.exp %162 : vector<128x128xf32>
    %164 = arith.mulf %159, %163 : vector<128x128xf32>
    %cst_58 = arith.constant 1.000000e+00 : f32
    %165 = vector.broadcast %cst_58 : f32 to vector<128x128xf32>
    %166 = arith.subf %165, %164 : vector<128x128xf32>
    %167 = arith.mulf %138, %166 : vector<128x128xf32>
    %cst_59 = arith.constant 1.000000e+00 : f32
    %168 = vector.broadcast %cst_59 : f32 to vector<128x128xf32>
    %169 = arith.addf %168, %167 : vector<128x128xf32>
    %170 = arith.mulf %131, %169 : vector<128x128xf32>
    %c1_60 = arith.constant 1 : index
    %c0_61 = arith.constant 0 : index
    %c0_62 = arith.constant 0 : index
    %171 = vector.load %arg5[%c1_60, %c0_61, %c0_62] : memref<2x128x128xf32, #tpu.memory_space<vmem>>, vector<1x128x128xf32>
    %172 = vector.shape_cast %171 : vector<1x128x128xf32> to vector<128x128xf32>
    %cst_63 = arith.constant dense<0.000000e+00> : vector<128x128xf32>
    %173 = tpu.matmul %170, %172, %cst_63 {dimension_numbers = #tpu.dot_dimension_numbers<[1], [0], [0], [1], [0, 0, 1, 1], [], []>} : vector<128x128xf32>, vector<128x128xf32>, vector<128x128xf32> -> vector<128x128xf32>
    %174 = vector.broadcast %6 : vector<1x128xf32> to vector<128x128xf32>
    %175 = arith.addf %173, %174 : vector<128x128xf32>
    %176 = arith.addf %102, %175 : vector<128x128xf32>
    %177 = vector.shape_cast %176 : vector<128x128xf32> to vector<8x16x128xf32>
    %c0_64 = arith.constant 0 : index
    %c0_65 = arith.constant 0 : index
    %c0_66 = arith.constant 0 : index
    %178 = vector.load %arg6[%c0_64, %c0_65, %c0_66] : memref<8x16x128xf32, #tpu.memory_space<vmem>>, vector<8x16x128xf32>
    tpu.vector_store %arg6[%c0_64, %c0_65, %c0_66], %177 {strides = array<i32>} : memref<8x16x128xf32, #tpu.memory_space<vmem>>, vector<8x16x128xf32>,
    return
  }
  func.func @transform_0(%arg0: i32) -> (i32, i32, i32) {
    %c0_i32 = arith.constant 0 : i32
    %c0_i32_0 = arith.constant 0 : i32
    %c0_i32_1 = arith.constant 0 : i32
    return %arg0, %c0_i32, %c0_i32_0 : i32, i32, i32
  }
  func.func @transform_1(%arg0: i32) -> (i32, i32) {
    %c0_i32 = arith.constant 0 : i32
    %c0_i32_0 = arith.constant 0 : i32
    %c0_i32_1 = arith.constant 0 : i32
    return %c0_i32, %c0_i32_0 : i32, i32
  }
  func.func @transform_2(%arg0: i32) -> (i32, i32) {
    %c0_i32 = arith.constant 0 : i32
    %c0_i32_0 = arith.constant 0 : i32
    %c0_i32_1 = arith.constant 0 : i32
    return %c0_i32, %c0_i32_0 : i32, i32
  }
  func.func @transform_3(%arg0: i32) -> (i32, i32, i32) {
    %c0_i32 = arith.constant 0 : i32
    %c0_i32_0 = arith.constant 0 : i32
    %c0_i32_1 = arith.constant 0 : i32
    %c0_i32_2 = arith.constant 0 : i32
    return %c0_i32, %c0_i32_0, %c0_i32_1 : i32, i32, i32
  }
  func.func @transform_4(%arg0: i32) -> (i32, i32, i32) {
    %c0_i32 = arith.constant 0 : i32
    %c0_i32_0 = arith.constant 0 : i32
    %c0_i32_1 = arith.constant 0 : i32
    %c0_i32_2 = arith.constant 0 : i32
    return %c0_i32, %c0_i32_0, %c0_i32_1 : i32, i32, i32
  }
  func.func @transform_5(%arg0: i32) -> (i32, i32, i32) {
    %c0_i32 = arith.constant 0 : i32
    %c0_i32_0 = arith.constant 0 : i32
    %c0_i32_1 = arith.constant 0 : i32
    return %arg0, %c0_i32, %c0_i32_0 : i32, i32, i32
  }
}

</mosaic_0001>

<llo_original>
// kernel: tpu_custom_call.1
$region0: #{tpu_custom_call.1}
  #allocation0 [shape = 'u32[]', space=smem, size = 0x4, offset = 0x4, fixed_abs, tag = 'smem constant byte address 0x4 - core index']
  #allocation1 [shape = 'u32[144,128]{1,0:T(1,128)}', space=vmem, size = 0x12000, scoped, tag = 'internal scratch']
  %s0 = inlined_call_operand.hbm [shape: f32[32,16,128], index: 0, kind: input, shape index: {}]
  %s1 = inlined_call_operand.vmem [shape: f32[6,128], index: 1, kind: input, shape index: {}]
  %s2 = inlined_call_operand.vmem [shape: f32[16,2], index: 2, kind: input, shape index: {}]
  %s3 = inlined_call_operand.hbm [shape: f32[2,16,16], index: 3, kind: input, shape index: {}]
  %s4 = inlined_call_operand.hbm [shape: f32[2,128,128], index: 4, kind: input, shape index: {}]
  %s5 = inlined_call_operand.hbm [shape: f32[32,16,128], index: 5, kind: output, shape index: {}]
  %s6 = sld [smem:[#allocation0]]
  $region65: #{tpu_custom_call.1} parent=0
    _
  %s8 = ssub.s32 1, %s6
  %s9 = scalar_select 0, %s8, %s6
  $region1: #{tpu_custom_call.1} parent=0
    #allocation2 [shape = 'u8[131072]{0}', space=vmem, size = 0x20000, scoped, tag = 'input window, operand 0']
    #allocation3 [shape = 's32[2]{0}', space=sflag, size = 0x8, scoped, tag = 'scoped memory for tpu_custom_call.1']
    #allocation4 [shape = 's32[2]{0}', space=sflag, size = 0x8, scoped, tag = 'scoped memory for tpu_custom_call.1']
    #allocation5 [shape = 'u8[16384]{0}', space=vmem, size = 0x4000, scoped, tag = 'input window, operand 3, single buffered']
    #allocation6 [shape = 's32[1]{0}', space=sflag, size = 0x4, scoped, tag = 'scoped memory for tpu_custom_call.1']
    #allocation7 [shape = 'u8[131072]{0}', space=vmem, size = 0x20000, scoped, tag = 'input window, operand 4, single buffered']
    #allocation8 [shape = 'u8[131072]{0}', space=vmem, size = 0x20000, scoped, tag = 'output window, operand 0']
    %10 = vsyncpa [#allocation3], 0
    %s11 = scalar_lea.sflag [#allocation3], 1
    %12 = vsyncpa %s11, 0
    %13 = vsyncpa [#allocation6], 0
    %14 = vsyncpa [#allocation4], 0
    %s15 = scalar_lea.sflag [#allocation4], 1
    %16 = vsyncpa %s15, 0
    loop: start=0, step=1, limit=6
    $region2: #{tpu_custom_call.1} parent=1 // loop_pre_header
      _
    $region3: #{tpu_custom_call.1} parent=1 // loop_header
      %s18 = sphi 0, %s22
      %p19 = scmp.ge.s32.totalorder %s18, 6
      %s28 = sphi 0, %s30
      %s31 = sphi 0, %s28
      %s32 = sphi 0, %s31
      %s48 = sphi 0, %s32
      %s52 = sphi 0, %s52
      %s54 = sphi 0, %s52
      %s55 = sphi 0, %s54
      %s69 = sphi 0, %s55
      %s73 = sphi 0, %s73
      %s75 = sphi 0, %s73
      %s76 = sphi 0, %s75
      %s90 = sphi 0, %s76
      %s94 = sphi 0, %s94
      %s96 = sphi 0, %s94
      %s97 = sphi 0, %s96
      %s111 = sphi 0, %s97
      %s115 = sphi 0, %s115
      %s117 = sphi 0, %s115
      %s118 = sphi 0, %s117
      %s132 = sphi 0, %s118
      %s138 = sphi 0, %s140
      %s141 = sphi 0, %s138
      %s142 = sphi 0, %s141
      %s158 = sphi 0, %s142
    $region4: #{tpu_custom_call.1} parent=1 // loop_header_branch
      %21 = sbr.rel (%p19) target = $region8
    $region5: #{tpu_custom_call.1} parent=1 // loop_body
      %s23 = ssub.s32 %s18, 1
      %s24 = ssub.s32 %s18, 2
      %s25 = sadd.s32 %s18, 1
      %s26 = ssub.s32 %s18, %s25
      %p27 = scmp.eq.s32.totalorder %s26, 0
      %s29 = sadd.s32 %s28, 1
      %s30 = scalar_select %p27, %s28, %s29
      %p33 = pneg %p27
      %p34 = scmp.eq.s32.totalorder %s18, 3
      %p35 = por %p33, %p34
      %p36 = scmp.ne.s32.totalorder %s28, %s31
      %p37 = scmp.eq.s32.totalorder %s18, 0
      %p38 = por %p36, %p37
      %p39 = scmp.ne.s32.totalorder %s28, %s31
      %p40 = scmp.eq.s32.totalorder %s23, 3
      %p41 = por %p39, %p40
      %p42 = scmp.ne.s32.totalorder %s31, %s32
      %p43 = scmp.eq.s32.totalorder %s23, 0
      %p44 = por %p42, %p43
      %p45 = scmp.ne.s32.totalorder %s31, %s32
      %p46 = scmp.eq.s32.totalorder %s24, 3
      %p47 = por %p45, %p46
      %p49 = scmp.ne.s32.totalorder %s32, %s48
      %p50 = scmp.eq.s32.totalorder %s24, 0
      %p51 = por %p49, %p50
      %s53 = sadd.s32 %s52, 1
      %p56 = scmp.eq.s32.totalorder %s18, 3
      %p57 = scmp.ne.s32.totalorder %s52, %s54
      %p58 = scmp.eq.s32.totalorder %s18, 0
      %p59 = por %p57, %p58
      %p60 = scmp.ne.s32.totalorder %s52, %s54
      %p61 = scmp.eq.s32.totalorder %s23, 3
      %p62 = por %p60, %p61
      %p63 = scmp.ne.s32.totalorder %s54, %s55
      %p64 = scmp.eq.s32.totalorder %s23, 0
      %p65 = por %p63, %p64
      %p66 = scmp.ne.s32.totalorder %s54, %s55
      %p67 = scmp.eq.s32.totalorder %s24, 3
      %p68 = por %p66, %p67
      %p70 = scmp.ne.s32.totalorder %s55, %s69
      %p71 = scmp.eq.s32.totalorder %s24, 0
      %p72 = por %p70, %p71
      %s74 = sadd.s32 %s73, 1
      %p77 = scmp.eq.s32.totalorder %s18, 3
      %p78 = scmp.ne.s32.totalorder %s73, %s75
      %p79 = scmp.eq.s32.totalorder %s18, 0
      %p80 = por %p78, %p79
      %p81 = scmp.ne.s32.totalorder %s73, %s75
      %p82 = scmp.eq.s32.totalorder %s23, 3
      %p83 = por %p81, %p82
      %p84 = scmp.ne.s32.totalorder %s75, %s76
      %p85 = scmp.eq.s32.totalorder %s23, 0
      %p86 = por %p84, %p85
      %p87 = scmp.ne.s32.totalorder %s75, %s76
      %p88 = scmp.eq.s32.totalorder %s24, 3
      %p89 = por %p87, %p88
      %p91 = scmp.ne.s32.totalorder %s76, %s90
      %p92 = scmp.eq.s32.totalorder %s24, 0
      %p93 = por %p91, %p92
      %s95 = sadd.s32 %s94, 1
      %p98 = scmp.eq.s32.totalorder %s18, 3
      %p99 = scmp.ne.s32.totalorder %s94, %s96
      %p100 = scmp.eq.s32.totalorder %s18, 0
      %p101 = por %p99, %p100
      %p102 = scmp.ne.s32.totalorder %s94, %s96
      %p103 = scmp.eq.s32.totalorder %s23, 3
      %p104 = por %p102, %p103
      %p105 = scmp.ne.s32.totalorder %s96, %s97
      %p106 = scmp.eq.s32.totalorder %s23, 0
      %p107 = por %p105, %p106
      %p108 = scmp.ne.s32.totalorder %s96, %s97
      %p109 = scmp.eq.s32.totalorder %s24, 3
      %p110 = por %p108, %p109
      %p112 = scmp.ne.s32.totalorder %s97, %s111
      %p113 = scmp.eq.s32.totalorder %s24, 0
      %p114 = por %p112, %p113
      %s116 = sadd.s32 %s115, 1
      %p119 = scmp.eq.s32.totalorder %s18, 3
      %p120 = scmp.ne.s32.totalorder %s115, %s117
      %p121 = scmp.eq.s32.totalorder %s18, 0
      %p122 = por %p120, %p121
      %p123 = scmp.ne.s32.totalorder %s115, %s117
      %p124 = scmp.eq.s32.totalorder %s23, 3
      %p125 = por %p123, %p124
      %p126 = scmp.ne.s32.totalorder %s117, %s118
      %p127 = scmp.eq.s32.totalorder %s23, 0
      %p128 = por %p126, %p127
      %p129 = scmp.ne.s32.totalorder %s117, %s118
      %p130 = scmp.eq.s32.totalorder %s24, 3
      %p131 = por %p129, %p130
      %p133 = scmp.ne.s32.totalorder %s118, %s132
      %p134 = scmp.eq.s32.totalorder %s24, 0
      %p135 = por %p133, %p134
      %s136 = ssub.s32 %s18, %s25
      %p137 = scmp.eq.s32.totalorder %s136, 0
      %s139 = sadd.s32 %s138, 1
      %s140 = scalar_select %p137, %s138, %s139
      %p143 = pneg %p137
      %p144 = scmp.eq.s32.totalorder %s18, 3
      %p145 = por %p143, %p144
      %p146 = scmp.ne.s32.totalorder %s138, %s141
      %p147 = scmp.eq.s32.totalorder %s18, 0
      %p148 = por %p146, %p147
      %p149 = scmp.ne.s32.totalorder %s138, %s141
      %p150 = scmp.eq.s32.totalorder %s23, 3
      %p151 = por %p149, %p150
      %p152 = scmp.ne.s32.totalorder %s141, %s142
      %p153 = scmp.eq.s32.totalorder %s23, 0
      %p154 = por %p152, %p153
      %p155 = scmp.ne.s32.totalorder %s141, %s142
      %p156 = scmp.eq.s32.totalorder %s24, 3
      %p157 = por %p155, %p156
      %p159 = scmp.ne.s32.totalorder %s142, %s158
      %p160 = scmp.eq.s32.totalorder %s24, 0
      %p161 = por %p159, %p160
      %p162 = scmp.le.s32.totalorder 1, %s18
      %p163 = scmp.lt.s32.totalorder %s18, 5
      %p164 = pnand %p162, %p163
      %p165 = pneg %p164
      // Predicated region
      $region9: #{tpu_custom_call.1} parent=5 // pred_check
        _
      $region10: #{tpu_custom_call.1} parent=5 // pred_check_branch
        %167 = sbr.rel (%p164) target = $region12
      $region11: #{tpu_custom_call.1} parent=5 // pred_region
        %s168 = ssub.s32 %s18, 1
        // Predicated region
        $region13: #{tpu_custom_call.1} parent=11 // pred_check
          %p169 = pneg %p65
        $region14: #{tpu_custom_call.1} parent=11 // pred_check_branch
          %171 = sbr.rel (%p169) target = $region16
        $region15: #{tpu_custom_call.1} parent=11 // pred_region
          _
        $region16: #{tpu_custom_call.1} parent=11 // pred_fallthru
          _
        // Predicated region
        $region17: #{tpu_custom_call.1} parent=11 // pred_check
          %p172 = pneg %p86
        $region18: #{tpu_custom_call.1} parent=11 // pred_check_branch
          %174 = sbr.rel (%p172) target = $region20
        $region19: #{tpu_custom_call.1} parent=11 // pred_region
          _
        $region20: #{tpu_custom_call.1} parent=11 // pred_fallthru
          _
        // Predicated region
        $region21: #{tpu_custom_call.1} parent=11 // pred_check
          %p175 = pneg %p107
        $region22: #{tpu_custom_call.1} parent=11 // pred_check_branch
          %177 = sbr.rel (%p175) target = $region24
        $region23: #{tpu_custom_call.1} parent=11 // pred_region
          %s179 = ssub.s32 512, 512
          %180 = vsyncadd [#allocation6], %s179
          %s181 = sshll.u32 [#allocation5], 4
          %s182 = int_to_ptr.vmem [resolvable:$true] %s181
          %187 = dma.hbm_to_vmem [thread:$0]  %s3, 512, %s182, [#allocation6], 128, 128, 8
        $region24: #{tpu_custom_call.1} parent=11 // pred_fallthru
          _
        // Predicated region
        $region25: #{tpu_custom_call.1} parent=11 // pred_check
          %p188 = pneg %p128
        $region26: #{tpu_custom_call.1} parent=11 // pred_check_branch
          %190 = sbr.rel (%p188) target = $region28
        $region27: #{tpu_custom_call.1} parent=11 // pred_region
          %s192 = ssub.s32 4096, 4096
          %193 = vsyncadd [#allocation6], %s192
          %s194 = sshll.u32 [#allocation7], 4
          %s195 = int_to_ptr.vmem [resolvable:$true] %s194
          %200 = dma.hbm_to_vmem [thread:$0]  %s4, 4096, %s195, [#allocation6], 128, 128, 8
        $region28: #{tpu_custom_call.1} parent=11 // pred_fallthru
          _
      $region12: #{tpu_custom_call.1} parent=5 // pred_fallthru
        _
      %p201 = scmp.lt.s32.totalorder %s18, 4
      // Predicated region
      $region29: #{tpu_custom_call.1} parent=5 // pred_check
        %p202 = pneg %p201
      $region30: #{tpu_custom_call.1} parent=5 // pred_check_branch
        %204 = sbr.rel (%p202) target = $region32
      $region31: #{tpu_custom_call.1} parent=5 // pred_region
        // Predicated region
        $region33: #{tpu_custom_call.1} parent=31 // pred_check
          %p205 = pneg %p38
        $region34: #{tpu_custom_call.1} parent=31 // pred_check_branch
          %207 = sbr.rel (%p205) target = $region36
        $region35: #{tpu_custom_call.1} parent=31 // pred_region
          %s208 = sand.u32 %s28, 1
          %s209 = scalar_lea.sflag [#allocation3], %s208
          %s210 = sand.u32 %s28, 1
          %s211 = smul.addr %s210, 128
          %s212 = scalar_lea.vmem [#allocation2], %s211
          %s213 = smul.u32 8, %s18
          %s215 = ssub.s32 2048, 2048
          %216 = vsyncadd %s209, %s215
          %s217 = smul.addr %s213, 2
          %s218 = smul.addr %s217, 128
          %s219 = scalar_lea.hbm %s0, %s218
          %s220 = sshll.u32 %s212, 4
          %s221 = int_to_ptr.vmem [resolvable:$true] %s220
          %226 = dma.hbm_to_vmem [thread:$0]  %s219, 2048, %s221, %s209, 128, 128, 8
        $region36: #{tpu_custom_call.1} parent=31 // pred_fallthru
          _
      $region32: #{tpu_custom_call.1} parent=5 // pred_fallthru
        _
      %p227 = scmp.le.s32.totalorder 1, %s18
      %p228 = scmp.lt.s32.totalorder %s18, 5
      %p229 = pnand %p227, %p228
      %p230 = pneg %p229
      // Predicated region
      $region37: #{tpu_custom_call.1} parent=5 // pred_check
        _
      $region38: #{tpu_custom_call.1} parent=5 // pred_check_branch
        %232 = sbr.rel (%p229) target = $region40
      $region39: #{tpu_custom_call.1} parent=5 // pred_region
        %s233 = ssub.s32 %s18, 1
        %s234 = sand.u32 %s31, 1
        %s235 = scalar_lea.sflag [#allocation3], %s234
        %s236 = sand.u32 %s31, 1
        %s237 = smul.addr %s236, 128
        %s238 = scalar_lea.vmem [#allocation2], %s237
        // Predicated region
        $region41: #{tpu_custom_call.1} parent=39 // pred_check
          %p239 = pneg %p44
        $region42: #{tpu_custom_call.1} parent=39 // pred_check_branch
          %241 = sbr.rel (%p239) target = $region44
        $region43: #{tpu_custom_call.1} parent=39 // pred_region
          %242 = dma.done %s235, 2048
        $region44: #{tpu_custom_call.1} parent=39 // pred_fallthru
          _
        // Predicated region
        $region45: #{tpu_custom_call.1} parent=39 // pred_check
          %p243 = pneg %p107
        $region46: #{tpu_custom_call.1} parent=39 // pred_check_branch
          %245 = sbr.rel (%p243) target = $region48
        $region47: #{tpu_custom_call.1} parent=39 // pred_region
          %246 = dma.done [#allocation6], 512
        $region48: #{tpu_custom_call.1} parent=39 // pred_fallthru
          _
        // Predicated region
        $region49: #{tpu_custom_call.1} parent=39 // pred_check
          %p247 = pneg %p128
        $region50: #{tpu_custom_call.1} parent=39 // pred_check_branch
          %249 = sbr.rel (%p247) target = $region52
        $region51: #{tpu_custom_call.1} parent=39 // pred_region
          %250 = dma.done [#allocation6], 4096
        $region52: #{tpu_custom_call.1} parent=39 // pred_fallthru
          _
        %s251 = sand.u32 %s31, 1
        %s252 = scalar_lea.sflag [#allocation3], %s251
        %s253 = sand.u32 %s31, 1
        %s254 = smul.addr %s253, 128
        %s255 = scalar_lea.vmem [#allocation2], %s254
        %p256 = pneg %p44
        %p257 = pneg %p41
        %p258 = pneg %p65
        %p259 = pneg %p62
        %p260 = pneg %p86
        %p261 = pneg %p83
        %p262 = pneg %p107
        %p263 = pneg %p104
        %p264 = pneg %p128
        %p265 = pneg %p125
        %p266 = pneg %p154
        %p267 = pneg %p151
        %s268 = sand.u32 %s141, 1
        %s269 = scalar_lea.sflag [#allocation4], %s268
        %s270 = sand.u32 %s141, 1
        %s271 = smul.addr %s270, 128
        %s272 = scalar_lea.vmem [#allocation8], %s271
        %s273 = smul.u32 8, %s23
        %s274 = smul.u32 8, %s23
        %v275 = vld [vmem:[%s1] sm:$0x3f]
        %v276 = vld [vmem:[%s2] sm:$0xff]
        %v277 = vld [vmem:[%s2 + $0x8] sm:$0xff]
        %v278 = vld [vmem:[%s238] sm:$0xff]
        %v279 = vld [vmem:[%s238 + $0x8] sm:$0xff]
        %v280 = vld [vmem:[%s238 + $0x10] sm:$0xff]
        %v281 = vld [vmem:[%s238 + $0x18] sm:$0xff]
        %v282 = vld [vmem:[%s238 + $0x20] sm:$0xff]
        %v283 = vld [vmem:[%s238 + $0x28] sm:$0xff]
        %v284 = vld [vmem:[%s238 + $0x30] sm:$0xff]
        %v285 = vld [vmem:[%s238 + $0x38] sm:$0xff]
        %v286 = vld [vmem:[%s238 + $0x40] sm:$0xff]
        %v287 = vld [vmem:[%s238 + $0x48] sm:$0xff]
        %v288 = vld [vmem:[%s238 + $0x50] sm:$0xff]
        %v289 = vld [vmem:[%s238 + $0x58] sm:$0xff]
        %v290 = vld [vmem:[%s238 + $0x60] sm:$0xff]
        %v291 = vld [vmem:[%s238 + $0x68] sm:$0xff]
        %v292 = vld [vmem:[%s238 + $0x70] sm:$0xff]
        %v293 = vld [vmem:[%s238 + $0x78] sm:$0xff]
        %294 = vadd.xlane.f32.xlu0 %v278
        %v295 = vpop.xlane.xlu0 %294
        %296 = vadd.xlane.f32.xlu0 %v279
        %v297 = vpop.xlane.xlu0 %296
        %298 = vadd.xlane.f32.xlu0 %v280
        %v299 = vpop.xlane.xlu0 %298
        %300 = vadd.xlane.f32.xlu0 %v281
        %v301 = vpop.xlane.xlu0 %300
        %302 = vadd.xlane.f32.xlu0 %v282
        %v303 = vpop.xlane.xlu0 %302
        %304 = vadd.xlane.f32.xlu0 %v283
        %v305 = vpop.xlane.xlu0 %304
        %306 = vadd.xlane.f32.xlu0 %v284
        %v307 = vpop.xlane.xlu0 %306
        %308 = vadd.xlane.f32.xlu0 %v285
        %v309 = vpop.xlane.xlu0 %308
        %310 = vadd.xlane.f32.xlu0 %v286
        %v311 = vpop.xlane.xlu0 %310
        %312 = vadd.xlane.f32.xlu0 %v287
        %v313 = vpop.xlane.xlu0 %312
        %314 = vadd.xlane.f32.xlu0 %v288
        %v315 = vpop.xlane.xlu0 %314
        %316 = vadd.xlane.f32.xlu0 %v289
        %v317 = vpop.xlane.xlu0 %316
        %318 = vadd.xlane.f32.xlu0 %v290
        %v319 = vpop.xlane.xlu0 %318
        %320 = vadd.xlane.f32.xlu0 %v291
        %v321 = vpop.xlane.xlu0 %320
        %322 = vadd.xlane.f32.xlu0 %v292
        %v323 = vpop.xlane.xlu0 %322
        %324 = vadd.xlane.f32.xlu0 %v293
        %v325 = vpop.xlane.xlu0 %324
        %v326 = vrcp.pop 128.0
        %v327 = vmul.f32 %v295, %v326
        %v328 = vmul.f32 %v297, %v326
        %v329 = vmul.f32 %v299, %v326
        %v330 = vmul.f32 %v301, %v326
        %v331 = vmul.f32 %v303, %v326
        %v332 = vmul.f32 %v305, %v326
        %v333 = vmul.f32 %v307, %v326
        %v334 = vmul.f32 %v309, %v326
        %v335 = vmul.f32 %v311, %v326
        %v336 = vmul.f32 %v313, %v326
        %v337 = vmul.f32 %v315, %v326
        %v338 = vmul.f32 %v317, %v326
        %v339 = vmul.f32 %v319, %v326
        %v340 = vmul.f32 %v321, %v326
        %v341 = vmul.f32 %v323, %v326
        %v342 = vmul.f32 %v325, %v326
        %v343 = vsub.f32 %v278, %v327
        %v344 = vsub.f32 %v279, %v328
        %v345 = vsub.f32 %v280, %v329
        %v346 = vsub.f32 %v281, %v330
        %v347 = vsub.f32 %v282, %v331
        %v348 = vsub.f32 %v283, %v332
        %v349 = vsub.f32 %v284, %v333
        %v350 = vsub.f32 %v285, %v334
        %v351 = vsub.f32 %v286, %v335
        %v352 = vsub.f32 %v287, %v336
        %v353 = vsub.f32 %v288, %v337
        %v354 = vsub.f32 %v289, %v338
        %v355 = vsub.f32 %v290, %v339
        %v356 = vsub.f32 %v291, %v340
        %v357 = vsub.f32 %v292, %v341
        %v358 = vsub.f32 %v293, %v342
        %v359 = vmul.f32 %v343, %v343
        %v360 = vmul.f32 %v344, %v344
        %v361 = vmul.f32 %v345, %v345
        %v362 = vmul.f32 %v346, %v346
        %v363 = vmul.f32 %v347, %v347
        %v364 = vmul.f32 %v348, %v348
        %v365 = vmul.f32 %v349, %v349
        %v366 = vmul.f32 %v350, %v350
        %v367 = vmul.f32 %v351, %v351
        %v368 = vmul.f32 %v352, %v352
        %v369 = vmul.f32 %v353, %v353
        %v370 = vmul.f32 %v354, %v354
        %v371 = vmul.f32 %v355, %v355
        %v372 = vmul.f32 %v356, %v356
        %v373 = vmul.f32 %v357, %v357
        %v374 = vmul.f32 %v358, %v358
        %375 = vadd.xlane.f32.xlu0 %v359
        %v376 = vpop.xlane.xlu0 %375
        %377 = vadd.xlane.f32.xlu0 %v360
        %v378 = vpop.xlane.xlu0 %377
        %379 = vadd.xlane.f32.xlu0 %v361
        %v380 = vpop.xlane.xlu0 %379
        %381 = vadd.xlane.f32.xlu0 %v362
        %v382 = vpop.xlane.xlu0 %381
        %383 = vadd.xlane.f32.xlu0 %v363
        %v384 = vpop.xlane.xlu0 %383
        %385 = vadd.xlane.f32.xlu0 %v364
        %v386 = vpop.xlane.xlu0 %385
        %387 = vadd.xlane.f32.xlu0 %v365
        %v388 = vpop.xlane.xlu0 %387
        %389 = vadd.xlane.f32.xlu0 %v366
        %v390 = vpop.xlane.xlu0 %389
        %391 = vadd.xlane.f32.xlu0 %v367
        %v392 = vpop.xlane.xlu0 %391
        %393 = vadd.xlane.f32.xlu0 %v368
        %v394 = vpop.xlane.xlu0 %393
        %395 = vadd.xlane.f32.xlu0 %v369
        %v396 = vpop.xlane.xlu0 %395
        %397 = vadd.xlane.f32.xlu0 %v370
        %v398 = vpop.xlane.xlu0 %397
        %399 = vadd.xlane.f32.xlu0 %v371
        %v400 = vpop.xlane.xlu0 %399
        %401 = vadd.xlane.f32.xlu0 %v372
        %v402 = vpop.xlane.xlu0 %401
        %403 = vadd.xlane.f32.xlu0 %v373
        %v404 = vpop.xlane.xlu0 %403
        %405 = vadd.xlane.f32.xlu0 %v374
        %v406 = vpop.xlane.xlu0 %405
        %v407 = vmul.f32 %v376, %v326
        %v408 = vmul.f32 %v378, %v326
        %v409 = vmul.f32 %v380, %v326
        %v410 = vmul.f32 %v382, %v326
        %v411 = vmul.f32 %v384, %v326
        %v412 = vmul.f32 %v386, %v326
        %v413 = vmul.f32 %v388, %v326
        %v414 = vmul.f32 %v390, %v326
        %v415 = vmul.f32 %v392, %v326
        %v416 = vmul.f32 %v394, %v326
        %v417 = vmul.f32 %v396, %v326
        %v418 = vmul.f32 %v398, %v326
        %v419 = vmul.f32 %v400, %v326
        %v420 = vmul.f32 %v402, %v326
        %v421 = vmul.f32 %v404, %v326
        %v422 = vmul.f32 %v406, %v326
        %v423 = vadd.f32 %v407, 1e-05
        %v424 = vadd.f32 %v408, 1e-05
        %v425 = vadd.f32 %v409, 1e-05
        %v426 = vadd.f32 %v410, 1e-05
        %v427 = vadd.f32 %v411, 1e-05
        %v428 = vadd.f32 %v412, 1e-05
        %v429 = vadd.f32 %v413, 1e-05
        %v430 = vadd.f32 %v414, 1e-05
        %v431 = vadd.f32 %v415, 1e-05
        %v432 = vadd.f32 %v416, 1e-05
        %v433 = vadd.f32 %v417, 1e-05
        %v434 = vadd.f32 %v418, 1e-05
        %v435 = vadd.f32 %v419, 1e-05
        %v436 = vadd.f32 %v420, 1e-05
        %v437 = vadd.f32 %v421, 1e-05
        %v438 = vadd.f32 %v422, 1e-05
        %v439 = vrsqrt.pop %v423
        %v440 = vrsqrt.pop %v424
        %v441 = vrsqrt.pop %v425
        %v442 = vrsqrt.pop %v426
        %v443 = vrsqrt.pop %v427
        %v444 = vrsqrt.pop %v428
        %v445 = vrsqrt.pop %v429
        %v446 = vrsqrt.pop %v430
        %v447 = vrsqrt.pop %v431
        %v448 = vrsqrt.pop %v432
        %v449 = vrsqrt.pop %v433
        %v450 = vrsqrt.pop %v434
        %v451 = vrsqrt.pop %v435
        %v452 = vrsqrt.pop %v436
        %v453 = vrsqrt.pop %v437
        %v454 = vrsqrt.pop %v438
        %v455 = vmul.f32 %v343, %v439
        %v456 = vmul.f32 %v344, %v440
        %v457 = vmul.f32 %v345, %v441
        %v458 = vmul.f32 %v346, %v442
        %v459 = vmul.f32 %v347, %v443
        %v460 = vmul.f32 %v348, %v444
        %v461 = vmul.f32 %v349, %v445
        %v462 = vmul.f32 %v350, %v446
        %v463 = vmul.f32 %v351, %v447
        %v464 = vmul.f32 %v352, %v448
        %v465 = vmul.f32 %v353, %v449
        %v466 = vmul.f32 %v354, %v450
        %v467 = vmul.f32 %v355, %v451
        %v468 = vmul.f32 %v356, %v452
        %v469 = vmul.f32 %v357, %v453
        %v470 = vmul.f32 %v358, %v454
        %v471 = vlaneseq
        %v472 = vshrl.u32 %v471, 7
        %v473 = vsub.s32 0, %v472
        %v474 = vrot.slane %v275, %v473
        %v475 = vmul.f32 %v455, %v474
        %v476 = vmul.f32 %v456, %v474
        %v477 = vmul.f32 %v457, %v474
        %v478 = vmul.f32 %v458, %v474
        %v479 = vmul.f32 %v459, %v474
        %v480 = vmul.f32 %v460, %v474
        %v481 = vmul.f32 %v461, %v474
        %v482 = vmul.f32 %v462, %v474
        %v483 = vmul.f32 %v463, %v474
        %v484 = vmul.f32 %v464, %v474
        %v485 = vmul.f32 %v465, %v474
        %v486 = vmul.f32 %v466, %v474
        %v487 = vmul.f32 %v467, %v474
        %v488 = vmul.f32 %v468, %v474
        %v489 = vmul.f32 %v469, %v474
        %v490 = vmul.f32 %v470, %v474
        %v491 = vlaneseq
        %v492 = vshrl.u32 %v491, 7
        %v493 = vsub.s32 1, %v492
        %v494 = vrot.slane %v275, %v493
        %v495 = vadd.f32 %v475, %v494
        %v496 = vadd.f32 %v476, %v494
        %v497 = vadd.f32 %v477, %v494
        %v498 = vadd.f32 %v478, %v494
        %v499 = vadd.f32 %v479, %v494
        %v500 = vadd.f32 %v480, %v494
        %v501 = vadd.f32 %v481, %v494
        %v502 = vadd.f32 %v482, %v494
        %v503 = vadd.f32 %v483, %v494
        %v504 = vadd.f32 %v484, %v494
        %v505 = vadd.f32 %v485, %v494
        %v506 = vadd.f32 %v486, %v494
        %v507 = vadd.f32 %v487, %v494
        %v508 = vadd.f32 %v488, %v494
        %v509 = vadd.f32 %v489, %v494
        %v510 = vadd.f32 %v490, %v494
        %v511 = vld [vmem:[#allocation5] sm:$0xff]
        %v512 = vld [vmem:[#allocation5 + $0x8] sm:$0xff]
        %514 = vset.pattern.permute.xlu0 0
        %515 = vperm.xlu0 %514, %v276
        %v516 = vpop.permute.xlu0 %515
        %519 = vset.pattern.permute.xlu0 0
        %520 = vperm.xlu0 %519, %v277
        %v521 = vpop.permute.xlu0 %520
        %vm523 = vcmask 130048
        %v525 = vsel %vm523, %v511, 0
        %v528 = vsel %vm523, %v512, 0
        %530 = vmatprep.subr.mxu0 0.0
        %531 = vmatpush1.msra.mxu0 0.0
        %532 = vmatprep.subr.mxu0 0.0
        %533 = vmatpush1.msra.mxu0 0.0
        %534 = vmatprep.subr.mxu0 0.0
        %535 = vmatpush1.msra.mxu0 0.0
        %536 = vmatprep.subr.mxu0 0.0
        %537 = vmatpush1.msra.mxu0 0.0
        %538 = vmatprep.subr.mxu0 0.0
        %539 = vmatpush1.msra.mxu0 0.0
        %540 = vmatprep.subr.mxu0 0.0
        %541 = vmatpush1.msra.mxu0 0.0
        %542 = vmatprep.subr.mxu0 0.0
        %543 = vmatpush1.msra.mxu0 0.0
        %544 = vmatprep.subr.mxu0 0.0
        %545 = vmatpush1.msra.mxu0 0.0
        %546 = vmatprep.subr.mxu0 0.0
        %547 = vmatpush1.msra.mxu0 0.0
        %548 = vmatprep.subr.mxu0 0.0
        %549 = vmatpush1.msra.mxu0 0.0
        %550 = vmatprep.subr.mxu0 0.0
        %551 = vmatpush1.msra.mxu0 0.0
        %552 = vmatprep.subr.mxu0 0.0
        %553 = vmatpush1.msra.mxu0 0.0
        %554 = vmatprep.subr.mxu0 0.0
        %555 = vmatpush1.msra.mxu0 0.0
        %556 = vmatprep.subr.mxu0 0.0
        %557 = vmatpush1.msra.mxu0 0.0
        %558 = vmatprep.subr.mxu0 %v498
        %559 = vmatpush1.msra.mxu0 %v496
        %560 = vmatprep.subr.mxu0 %v497
        %561 = vmatpush1.msra.mxu0 %v495
        %562 = vmatprep.subr.mxu0 0.0
        %563 = vmatpush2.msra.mxu0 0.0
        %564 = vmatprep.subr.mxu0 0.0
        %565 = vmatpush2.msra.mxu0 0.0
        %566 = vmatprep.subr.mxu0 0.0
        %567 = vmatpush2.msra.mxu0 0.0
        %568 = vmatprep.subr.mxu0 0.0
        %569 = vmatpush2.msra.mxu0 0.0
        %570 = vmatprep.subr.mxu0 0.0
        %571 = vmatpush2.msra.mxu0 0.0
        %572 = vmatprep.subr.mxu0 0.0
        %573 = vmatpush2.msra.mxu0 0.0
        %574 = vmatprep.subr.mxu0 0.0
        %575 = vmatpush2.msra.mxu0 0.0
        %576 = vmatprep.subr.mxu0 0.0
        %577 = vmatpush2.msra.mxu0 0.0
        %578 = vmatprep.subr.mxu0 0.0
        %579 = vmatpush2.msra.mxu0 0.0
        %580 = vmatprep.subr.mxu0 0.0
        %581 = vmatpush2.msra.mxu0 0.0
        %582 = vmatprep.subr.mxu0 0.0
        %583 = vmatpush2.msra.mxu0 0.0
        %584 = vmatprep.subr.mxu0 0.0
        %585 = vmatpush2.msra.mxu0 0.0
        %586 = vmatprep.subr.mxu0 0.0
        %587 = vmatpush2.msra.mxu0 0.0
        %588 = vmatprep.subr.mxu0 0.0
        %589 = vmatpush2.msra.mxu0 0.0
        %590 = vmatprep.subr.mxu0 0.0
        %591 = vmatpush2.msra.mxu0 0.0
        %592 = vmatprep.subr.mxu0 0.0
        %593 = vmatpush2.msra.mxu0 0.0
        %594 = vmatprep.mubr.f32.mxu0 0.0
        %595 = vmatmul.mubr.f32.gmra.mxu0 %v525
        %v596 = vpop.f32.mrf.mxu0
        %v597 = vadd.f32 %v516, %v596
        %v598 = vpop.f32.mrf.mxu0
        %v599 = vadd.f32 %v516, %v598
        %600 = vmatprep.mubr.f32.mxu0 0.0
        %601 = vmatmul.mubr.f32.gmra.mxu0 %v528
        %v602 = vpop.f32.mrf.mxu0
        %v603 = vadd.f32 %v521, %v602
        %v604 = vpop.f32.mrf.mxu0
        %v605 = vadd.f32 %v521, %v604
        %606 = vdwg.mxu0
        %607 = vmatprep.subr.mxu0 0.0
        %608 = vmatpush1.msra.mxu0 0.0
        %609 = vmatprep.subr.mxu0 0.0
        %610 = vmatpush1.msra.mxu0 0.0
        %611 = vmatprep.subr.mxu0 0.0
        %612 = vmatpush1.msra.mxu0 0.0
        %613 = vmatprep.subr.mxu0 0.0
        %614 = vmatpush1.msra.mxu0 0.0
        %615 = vmatprep.subr.mxu0 0.0
        %616 = vmatpush1.msra.mxu0 0.0
        %617 = vmatprep.subr.mxu0 0.0
        %618 = vmatpush1.msra.mxu0 0.0
        %619 = vmatprep.subr.mxu0 0.0
        %620 = vmatpush1.msra.mxu0 0.0
        %621 = vmatprep.subr.mxu0 0.0
        %622 = vmatpush1.msra.mxu0 0.0
        %623 = vmatprep.subr.mxu0 0.0
        %624 = vmatpush1.msra.mxu0 0.0
        %625 = vmatprep.subr.mxu0 0.0
        %626 = vmatpush1.msra.mxu0 0.0
        %627 = vmatprep.subr.mxu0 0.0
        %628 = vmatpush1.msra.mxu0 0.0
        %629 = vmatprep.subr.mxu0 0.0
        %630 = vmatpush1.msra.mxu0 0.0
        %631 = vmatprep.subr.mxu0 0.0
        %632 = vmatpush1.msra.mxu0 0.0
        %633 = vmatprep.subr.mxu0 0.0
        %634 = vmatpush1.msra.mxu0 0.0
        %635 = vmatprep.subr.mxu0 %v502
        %636 = vmatpush1.msra.mxu0 %v500
        %637 = vmatprep.subr.mxu0 %v501
        %638 = vmatpush1.msra.mxu0 %v499
        %639 = vmatprep.subr.mxu0 0.0
        %640 = vmatpush2.msra.mxu0 0.0
        %641 = vmatprep.subr.mxu0 0.0
        %642 = vmatpush2.msra.mxu0 0.0
        %643 = vmatprep.subr.mxu0 0.0
        %644 = vmatpush2.msra.mxu0 0.0
        %645 = vmatprep.subr.mxu0 0.0
        %646 = vmatpush2.msra.mxu0 0.0
        %647 = vmatprep.subr.mxu0 0.0
        %648 = vmatpush2.msra.mxu0 0.0
        %649 = vmatprep.subr.mxu0 0.0
        %650 = vmatpush2.msra.mxu0 0.0
        %651 = vmatprep.subr.mxu0 0.0
        %652 = vmatpush2.msra.mxu0 0.0
        %653 = vmatprep.subr.mxu0 0.0
        %654 = vmatpush2.msra.mxu0 0.0
        %655 = vmatprep.subr.mxu0 0.0
        %656 = vmatpush2.msra.mxu0 0.0
        %657 = vmatprep.subr.mxu0 0.0
        %658 = vmatpush2.msra.mxu0 0.0
        %659 = vmatprep.subr.mxu0 0.0
        %660 = vmatpush2.msra.mxu0 0.0
        %661 = vmatprep.subr.mxu0 0.0
        %662 = vmatpush2.msra.mxu0 0.0
        %663 = vmatprep.subr.mxu0 0.0
        %664 = vmatpush2.msra.mxu0 0.0
        %665 = vmatprep.subr.mxu0 0.0
        %666 = vmatpush2.msra.mxu0 0.0
        %667 = vmatprep.subr.mxu0 0.0
        %668 = vmatpush2.msra.mxu0 0.0
        %669 = vmatprep.subr.mxu0 0.0
        %670 = vmatpush2.msra.mxu0 0.0
        %671 = vmatprep.mubr.f32.mxu0 0.0
        %672 = vmatmul.mubr.f32.gmra.mxu0 %v525
        %v673 = vpop.f32.mrf.mxu0
        %v674 = vadd.f32 %v516, %v673
        %v675 = vpop.f32.mrf.mxu0
        %v676 = vadd.f32 %v516, %v675
        %677 = vmatprep.mubr.f32.mxu0 0.0
        %678 = vmatmul.mubr.f32.gmra.mxu0 %v528
        %v679 = vpop.f32.mrf.mxu0
        %v680 = vadd.f32 %v521, %v679
        %v681 = vpop.f32.mrf.mxu0
        %v682 = vadd.f32 %v521, %v681
        %683 = vdwg.mxu0
        %684 = vmatprep.subr.mxu0 0.0
        %685 = vmatpush1.msra.mxu0 0.0
        %686 = vmatprep.subr.mxu0 0.0
        %687 = vmatpush1.msra.mxu0 0.0
        %688 = vmatprep.subr.mxu0 0.0
        %689 = vmatpush1.msra.mxu0 0.0
        %690 = vmatprep.subr.mxu0 0.0
        %691 = vmatpush1.msra.mxu0 0.0
        %692 = vmatprep.subr.mxu0 0.0
        %693 = vmatpush1.msra.mxu0 0.0
        %694 = vmatprep.subr.mxu0 0.0
        %695 = vmatpush1.msra.mxu0 0.0
        %696 = vmatprep.subr.mxu0 0.0
        %697 = vmatpush1.msra.mxu0 0.0
        %698 = vmatprep.subr.mxu0 0.0
        %699 = vmatpush1.msra.mxu0 0.0
        %700 = vmatprep.subr.mxu0 0.0
        %701 = vmatpush1.msra.mxu0 0.0
        %702 = vmatprep.subr.mxu0 0.0
        %703 = vmatpush1.msra.mxu0 0.0
        %704 = vmatprep.subr.mxu0 0.0
        %705 = vmatpush1.msra.mxu0 0.0
        %706 = vmatprep.subr.mxu0 0.0
        %707 = vmatpush1.msra.mxu0 0.0
        %708 = vmatprep.subr.mxu0 0.0
        %709 = vmatpush1.msra.mxu0 0.0
        %710 = vmatprep.subr.mxu0 0.0
        %711 = vmatpush1.msra.mxu0 0.0
        %712 = vmatprep.subr.mxu0 %v506
        %713 = vmatpush1.msra.mxu0 %v504
        %714 = vmatprep.subr.mxu0 %v505
        %715 = vmatpush1.msra.mxu0 %v503
        %716 = vmatprep.subr.mxu0 0.0
        %717 = vmatpush2.msra.mxu0 0.0
        %718 = vmatprep.subr.mxu0 0.0
        %719 = vmatpush2.msra.mxu0 0.0
        %720 = vmatprep.subr.mxu0 0.0
        %721 = vmatpush2.msra.mxu0 0.0
        %722 = vmatprep.subr.mxu0 0.0
        %723 = vmatpush2.msra.mxu0 0.0
        %724 = vmatprep.subr.mxu0 0.0
        %725 = vmatpush2.msra.mxu0 0.0
        %726 = vmatprep.subr.mxu0 0.0
        %727 = vmatpush2.msra.mxu0 0.0
        %728 = vmatprep.subr.mxu0 0.0
        %729 = vmatpush2.msra.mxu0 0.0
        %730 = vmatprep.subr.mxu0 0.0
        %731 = vmatpush2.msra.mxu0 0.0
        %732 = vmatprep.subr.mxu0 0.0
        %733 = vmatpush2.msra.mxu0 0.0
        %734 = vmatprep.subr.mxu0 0.0
        %735 = vmatpush2.msra.mxu0 0.0
        %736 = vmatprep.subr.mxu0 0.0
        %737 = vmatpush2.msra.mxu0 0.0
        %738 = vmatprep.subr.mxu0 0.0
        %739 = vmatpush2.msra.mxu0 0.0
        %740 = vmatprep.subr.mxu0 0.0
        %741 = vmatpush2.msra.mxu0 0.0
        %742 = vmatprep.subr.mxu0 0.0
        %743 = vmatpush2.msra.mxu0 0.0
        %744 = vmatprep.subr.mxu0 0.0
        %745 = vmatpush2.msra.mxu0 0.0
        %746 = vmatprep.subr.mxu0 0.0
        %747 = vmatpush2.msra.mxu0 0.0
        %748 = vmatprep.mubr.f32.mxu0 0.0
        %749 = vmatmul.mubr.f32.gmra.mxu0 %v525
        %v750 = vpop.f32.mrf.mxu0
        %v751 = vadd.f32 %v516, %v750
        %v752 = vpop.f32.mrf.mxu0
        %v753 = vadd.f32 %v516, %v752
        %754 = vmatprep.mubr.f32.mxu0 0.0
        %755 = vmatmul.mubr.f32.gmra.mxu0 %v528
        %v756 = vpop.f32.mrf.mxu0
        %v757 = vadd.f32 %v521, %v756
        %v758 = vpop.f32.mrf.mxu0
        %v759 = vadd.f32 %v521, %v758
        %760 = vdwg.mxu0
        %761 = vmatprep.subr.mxu0 0.0
        %762 = vmatpush1.msra.mxu0 0.0
        %763 = vmatprep.subr.mxu0 0.0
        %764 = vmatpush1.msra.mxu0 0.0
        %765 = vmatprep.subr.mxu0 0.0
        %766 = vmatpush1.msra.mxu0 0.0
        %767 = vmatprep.subr.mxu0 0.0
        %768 = vmatpush1.msra.mxu0 0.0
        %769 = vmatprep.subr.mxu0 0.0
        %770 = vmatpush1.msra.mxu0 0.0
        %771 = vmatprep.subr.mxu0 0.0
        %772 = vmatpush1.msra.mxu0 0.0
        %773 = vmatprep.subr.mxu0 0.0
        %774 = vmatpush1.msra.mxu0 0.0
        %775 = vmatprep.subr.mxu0 0.0
        %776 = vmatpush1.msra.mxu0 0.0
        %777 = vmatprep.subr.mxu0 0.0
        %778 = vmatpush1.msra.mxu0 0.0
        %779 = vmatprep.subr.mxu0 0.0
        %780 = vmatpush1.msra.mxu0 0.0
        %781 = vmatprep.subr.mxu0 0.0
        %782 = vmatpush1.msra.mxu0 0.0
        %783 = vmatprep.subr.mxu0 0.0
        %784 = vmatpush1.msra.mxu0 0.0
        %785 = vmatprep.subr.mxu0 0.0
        %786 = vmatpush1.msra.mxu0 0.0
        %787 = vmatprep.subr.mxu0 0.0
        %788 = vmatpush1.msra.mxu0 0.0
        %789 = vmatprep.subr.mxu0 %v510
        %790 = vmatpush1.msra.mxu0 %v508
        %791 = vmatprep.subr.mxu0 %v509
        %792 = vmatpush1.msra.mxu0 %v507
        %793 = vmatprep.subr.mxu0 0.0
        %794 = vmatpush2.msra.mxu0 0.0
        %795 = vmatprep.subr.mxu0 0.0
        %796 = vmatpush2.msra.mxu0 0.0
        %797 = vmatprep.subr.mxu0 0.0
        %798 = vmatpush2.msra.mxu0 0.0
        %799 = vmatprep.subr.mxu0 0.0
        %800 = vmatpush2.msra.mxu0 0.0
        %801 = vmatprep.subr.mxu0 0.0
        %802 = vmatpush2.msra.mxu0 0.0
        %803 = vmatprep.subr.mxu0 0.0
        %804 = vmatpush2.msra.mxu0 0.0
        %805 = vmatprep.subr.mxu0 0.0
        %806 = vmatpush2.msra.mxu0 0.0
        %807 = vmatprep.subr.mxu0 0.0
        %808 = vmatpush2.msra.mxu0 0.0
        %809 = vmatprep.subr.mxu0 0.0
        %810 = vmatpush2.msra.mxu0 0.0
        %811 = vmatprep.subr.mxu0 0.0
        %812 = vmatpush2.msra.mxu0 0.0
        %813 = vmatprep.subr.mxu0 0.0
        %814 = vmatpush2.msra.mxu0 0.0
        %815 = vmatprep.subr.mxu0 0.0
        %816 = vmatpush2.msra.mxu0 0.0
        %817 = vmatprep.subr.mxu0 0.0
        %818 = vmatpush2.msra.mxu0 0.0
        %819 = vmatprep.subr.mxu0 0.0
        %820 = vmatpush2.msra.mxu0 0.0
        %821 = vmatprep.subr.mxu0 0.0
        %822 = vmatpush2.msra.mxu0 0.0
        %823 = vmatprep.subr.mxu0 0.0
        %824 = vmatpush2.msra.mxu0 0.0
        %825 = vmatprep.mubr.f32.mxu0 0.0
        %826 = vmatmul.mubr.f32.gmra.mxu0 %v525
        %v827 = vpop.f32.mrf.mxu0
        %v828 = vadd.f32 %v516, %v827
        %v829 = vpop.f32.mrf.mxu0
        %v830 = vadd.f32 %v516, %v829
        %831 = vmatprep.mubr.f32.mxu0 0.0
        %832 = vmatmul.mubr.f32.gmra.mxu0 %v528
        %v833 = vpop.f32.mrf.mxu0
        %v834 = vadd.f32 %v521, %v833
        %v835 = vpop.f32.mrf.mxu0
        %v836 = vadd.f32 %v521, %v835
        %837 = vdwg.mxu0
        %v838 = vmul.f32 %v597, 0.5
        %v839 = vmul.f32 %v599, 0.5
        %v840 = vmul.f32 %v674, 0.5
        %v841 = vmul.f32 %v676, 0.5
        %v842 = vmul.f32 %v751, 0.5
        %v843 = vmul.f32 %v753, 0.5
        %v844 = vmul.f32 %v828, 0.5
        %v845 = vmul.f32 %v830, 0.5
        %v846 = vmul.f32 %v603, 0.5
        %v847 = vmul.f32 %v605, 0.5
        %v848 = vmul.f32 %v680, 0.5
        %v849 = vmul.f32 %v682, 0.5
        %v850 = vmul.f32 %v757, 0.5
        %v851 = vmul.f32 %v759, 0.5
        %v852 = vmul.f32 %v834, 0.5
        %v853 = vmul.f32 %v836, 0.5
        %v854 = vmul.f32 %v597, 0.70710677
        %v855 = vmul.f32 %v599, 0.70710677
        %v856 = vmul.f32 %v674, 0.70710677
        %v857 = vmul.f32 %v676, 0.70710677
        %v858 = vmul.f32 %v751, 0.70710677
        %v859 = vmul.f32 %v753, 0.70710677
        %v860 = vmul.f32 %v828, 0.70710677
        %v861 = vmul.f32 %v830, 0.70710677
        %v862 = vmul.f32 %v603, 0.70710677
        %v863 = vmul.f32 %v605, 0.70710677
        %v864 = vmul.f32 %v680, 0.70710677
        %v865 = vmul.f32 %v682, 0.70710677
        %v866 = vmul.f32 %v757, 0.70710677
        %v867 = vmul.f32 %v759, 0.70710677
        %v868 = vmul.f32 %v834, 0.70710677
        %v869 = vmul.f32 %v836, 0.70710677
        %vm870 = vcmp.ge.f32.partialorder %v854, 0.0
        %vm871 = vcmp.ge.f32.partialorder %v855, 0.0
        %vm872 = vcmp.ge.f32.partialorder %v856, 0.0
        %vm873 = vcmp.ge.f32.partialorder %v857, 0.0
        %vm874 = vcmp.ge.f32.partialorder %v858, 0.0
        %vm875 = vcmp.ge.f32.partialorder %v859, 0.0
        %vm876 = vcmp.ge.f32.partialorder %v860, 0.0
        %vm877 = vcmp.ge.f32.partialorder %v861, 0.0
        %vm878 = vcmp.ge.f32.partialorder %v862, 0.0
        %vm879 = vcmp.ge.f32.partialorder %v863, 0.0
        %vm880 = vcmp.ge.f32.partialorder %v864, 0.0
        %vm881 = vcmp.ge.f32.partialorder %v865, 0.0
        %vm882 = vcmp.ge.f32.partialorder %v866, 0.0
        %vm883 = vcmp.ge.f32.partialorder %v867, 0.0
        %vm884 = vcmp.ge.f32.partialorder %v868, 0.0
        %vm885 = vcmp.ge.f32.partialorder %v869, 0.0
        %v886 = vsel %vm870, 1.0, -1.0
        %v887 = vsel %vm871, 1.0, -1.0
        %v888 = vsel %vm872, 1.0, -1.0
        %v889 = vsel %vm873, 1.0, -1.0
        %v890 = vsel %vm874, 1.0, -1.0
        %v891 = vsel %vm875, 1.0, -1.0
        %v892 = vsel %vm876, 1.0, -1.0
        %v893 = vsel %vm877, 1.0, -1.0
        %v894 = vsel %vm878, 1.0, -1.0
        %v895 = vsel %vm879, 1.0, -1.0
        %v896 = vsel %vm880, 1.0, -1.0
        %v897 = vsel %vm881, 1.0, -1.0
        %v898 = vsel %vm882, 1.0, -1.0
        %v899 = vsel %vm883, 1.0, -1.0
        %v900 = vsel %vm884, 1.0, -1.0
        %v901 = vsel %vm885, 1.0, -1.0
        %v902 = vand.u32 2147483647, %v854
        %v903 = vand.u32 2147483647, %v855
        %v904 = vand.u32 2147483647, %v856
        %v905 = vand.u32 2147483647, %v857
        %v906 = vand.u32 2147483647, %v858
        %v907 = vand.u32 2147483647, %v859
        %v908 = vand.u32 2147483647, %v860
        %v909 = vand.u32 2147483647, %v861
        %v910 = vand.u32 2147483647, %v862
        %v911 = vand.u32 2147483647, %v863
        %v912 = vand.u32 2147483647, %v864
        %v913 = vand.u32 2147483647, %v865
        %v914 = vand.u32 2147483647, %v866
        %v915 = vand.u32 2147483647, %v867
        %v916 = vand.u32 2147483647, %v868
        %v917 = vand.u32 2147483647, %v869
        %v918 = vmul.f32 %v902, 0.3275911
        %v919 = vmul.f32 %v903, 0.3275911
        %v920 = vmul.f32 %v904, 0.3275911
        %v921 = vmul.f32 %v905, 0.3275911
        %v922 = vmul.f32 %v906, 0.3275911
        %v923 = vmul.f32 %v907, 0.3275911
        %v924 = vmul.f32 %v908, 0.3275911
        %v925 = vmul.f32 %v909, 0.3275911
        %v926 = vmul.f32 %v910, 0.3275911
        %v927 = vmul.f32 %v911, 0.3275911
        %v928 = vmul.f32 %v912, 0.3275911
        %v929 = vmul.f32 %v913, 0.3275911
        %v930 = vmul.f32 %v914, 0.3275911
        %v931 = vmul.f32 %v915, 0.3275911
        %v932 = vmul.f32 %v916, 0.3275911
        %v933 = vmul.f32 %v917, 0.3275911
        %v934 = vadd.f32 %v918, 1.0
        %v935 = vadd.f32 %v919, 1.0
        %v936 = vadd.f32 %v920, 1.0
        %v937 = vadd.f32 %v921, 1.0
        %v938 = vadd.f32 %v922, 1.0
        %v939 = vadd.f32 %v923, 1.0
        %v940 = vadd.f32 %v924, 1.0
        %v941 = vadd.f32 %v925, 1.0
        %v942 = vadd.f32 %v926, 1.0
        %v943 = vadd.f32 %v927, 1.0
        %v944 = vadd.f32 %v928, 1.0
        %v945 = vadd.f32 %v929, 1.0
        %v946 = vadd.f32 %v930, 1.0
        %v947 = vadd.f32 %v931, 1.0
        %v948 = vadd.f32 %v932, 1.0
        %v949 = vadd.f32 %v933, 1.0
        %v950 = vrcp.pop %v934
        %v951 = vmul.f32 1.0, %v950
        %v952 = vrcp.pop %v935
        %v953 = vmul.f32 1.0, %v952
        %v954 = vrcp.pop %v936
        %v955 = vmul.f32 1.0, %v954
        %v956 = vrcp.pop %v937
        %v957 = vmul.f32 1.0, %v956
        %v958 = vrcp.pop %v938
        %v959 = vmul.f32 1.0, %v958
        %v960 = vrcp.pop %v939
        %v961 = vmul.f32 1.0, %v960
        %v962 = vrcp.pop %v940
        %v963 = vmul.f32 1.0, %v962
        %v964 = vrcp.pop %v941
        %v965 = vmul.f32 1.0, %v964
        %v966 = vrcp.pop %v942
        %v967 = vmul.f32 1.0, %v966
        %v968 = vrcp.pop %v943
        %v969 = vmul.f32 1.0, %v968
        %v970 = vrcp.pop %v944
        %v971 = vmul.f32 1.0, %v970
        %v972 = vrcp.pop %v945
        %v973 = vmul.f32 1.0, %v972
        %v974 = vrcp.pop %v946
        %v975 = vmul.f32 1.0, %v974
        %v976 = vrcp.pop %v947
        %v977 = vmul.f32 1.0, %v976
        %v978 = vrcp.pop %v948
        %v979 = vmul.f32 1.0, %v978
        %v980 = vrcp.pop %v949
        %v981 = vmul.f32 1.0, %v980
        %v982 = vmul.f32 %v951, 1.0614054
        %v983 = vmul.f32 %v953, 1.0614054
        %v984 = vmul.f32 %v955, 1.0614054
        %v985 = vmul.f32 %v957, 1.0614054
        %v986 = vmul.f32 %v959, 1.0614054
        %v987 = vmul.f32 %v961, 1.0614054
        %v988 = vmul.f32 %v963, 1.0614054
        %v989 = vmul.f32 %v965, 1.0614054
        %v990 = vmul.f32 %v967, 1.0614054
        %v991 = vmul.f32 %v969, 1.0614054
        %v992 = vmul.f32 %v971, 1.0614054
        %v993 = vmul.f32 %v973, 1.0614054
        %v994 = vmul.f32 %v975, 1.0614054
        %v995 = vmul.f32 %v977, 1.0614054
        %v996 = vmul.f32 %v979, 1.0614054
        %v997 = vmul.f32 %v981, 1.0614054
        %v998 = vadd.f32 %v982, -1.4531521
        %v999 = vadd.f32 %v983, -1.4531521
        %v1000 = vadd.f32 %v984, -1.4531521
        %v1001 = vadd.f32 %v985, -1.4531521
        %v1002 = vadd.f32 %v986, -1.4531521
        %v1003 = vadd.f32 %v987, -1.4531521
        %v1004 = vadd.f32 %v988, -1.4531521
        %v1005 = vadd.f32 %v989, -1.4531521
        %v1006 = vadd.f32 %v990, -1.4531521
        %v1007 = vadd.f32 %v991, -1.4531521
        %v1008 = vadd.f32 %v992, -1.4531521
        %v1009 = vadd.f32 %v993, -1.4531521
        %v1010 = vadd.f32 %v994, -1.4531521
        %v1011 = vadd.f32 %v995, -1.4531521
        %v1012 = vadd.f32 %v996, -1.4531521
        %v1013 = vadd.f32 %v997, -1.4531521
        %v1014 = vmul.f32 %v998, %v951
        %v1015 = vmul.f32 %v999, %v953
        %v1016 = vmul.f32 %v1000, %v955
        %v1017 = vmul.f32 %v1001, %v957
        %v1018 = vmul.f32 %v1002, %v959
        %v1019 = vmul.f32 %v1003, %v961
        %v1020 = vmul.f32 %v1004, %v963
        %v1021 = vmul.f32 %v1005, %v965
        %v1022 = vmul.f32 %v1006, %v967
        %v1023 = vmul.f32 %v1007, %v969
        %v1024 = vmul.f32 %v1008, %v971
        %v1025 = vmul.f32 %v1009, %v973
        %v1026 = vmul.f32 %v1010, %v975
        %v1027 = vmul.f32 %v1011, %v977
        %v1028 = vmul.f32 %v1012, %v979
        %v1029 = vmul.f32 %v1013, %v981
        %v1030 = vadd.f32 %v1014, 1.4214138
        %v1031 = vadd.f32 %v1015, 1.4214138
        %v1032 = vadd.f32 %v1016, 1.4214138
        %v1033 = vadd.f32 %v1017, 1.4214138
        %v1034 = vadd.f32 %v1018, 1.4214138
        %v1035 = vadd.f32 %v1019, 1.4214138
        %v1036 = vadd.f32 %v1020, 1.4214138
        %v1037 = vadd.f32 %v1021, 1.4214138
        %v1038 = vadd.f32 %v1022, 1.4214138
        %v1039 = vadd.f32 %v1023, 1.4214138
        %v1040 = vadd.f32 %v1024, 1.4214138
        %v1041 = vadd.f32 %v1025, 1.4214138
        %v1042 = vadd.f32 %v1026, 1.4214138
        %v1043 = vadd.f32 %v1027, 1.4214138
        %v1044 = vadd.f32 %v1028, 1.4214138
        %v1045 = vadd.f32 %v1029, 1.4214138
        %v1046 = vmul.f32 %v1030, %v951
        %v1047 = vmul.f32 %v1031, %v953
        %v1048 = vmul.f32 %v1032, %v955
        %v1049 = vmul.f32 %v1033, %v957
        %v1050 = vmul.f32 %v1034, %v959
        %v1051 = vmul.f32 %v1035, %v961
        %v1052 = vmul.f32 %v1036, %v963
        %v1053 = vmul.f32 %v1037, %v965
        %v1054 = vmul.f32 %v1038, %v967
        %v1055 = vmul.f32 %v1039, %v969
        %v1056 = vmul.f32 %v1040, %v971
        %v1057 = vmul.f32 %v1041, %v973
        %v1058 = vmul.f32 %v1042, %v975
        %v1059 = vmul.f32 %v1043, %v977
        %v1060 = vmul.f32 %v1044, %v979
        %v1061 = vmul.f32 %v1045, %v981
        %v1062 = vadd.f32 %v1046, -0.28449672
        %v1063 = vadd.f32 %v1047, -0.28449672
        %v1064 = vadd.f32 %v1048, -0.28449672
        %v1065 = vadd.f32 %v1049, -0.28449672
        %v1066 = vadd.f32 %v1050, -0.28449672
        %v1067 = vadd.f32 %v1051, -0.28449672
        %v1068 = vadd.f32 %v1052, -0.28449672
        %v1069 = vadd.f32 %v1053, -0.28449672
        %v1070 = vadd.f32 %v1054, -0.28449672
        %v1071 = vadd.f32 %v1055, -0.28449672
        %v1072 = vadd.f32 %v1056, -0.28449672
        %v1073 = vadd.f32 %v1057, -0.28449672
        %v1074 = vadd.f32 %v1058, -0.28449672
        %v1075 = vadd.f32 %v1059, -0.28449672
        %v1076 = vadd.f32 %v1060, -0.28449672
        %v1077 = vadd.f32 %v1061, -0.28449672
        %v1078 = vmul.f32 %v1062, %v951
        %v1079 = vmul.f32 %v1063, %v953
        %v1080 = vmul.f32 %v1064, %v955
        %v1081 = vmul.f32 %v1065, %v957
        %v1082 = vmul.f32 %v1066, %v959
        %v1083 = vmul.f32 %v1067, %v961
        %v1084 = vmul.f32 %v1068, %v963
        %v1085 = vmul.f32 %v1069, %v965
        %v1086 = vmul.f32 %v1070, %v967
        %v1087 = vmul.f32 %v1071, %v969
        %v1088 = vmul.f32 %v1072, %v971
        %v1089 = vmul.f32 %v1073, %v973
        %v1090 = vmul.f32 %v1074, %v975
        %v1091 = vmul.f32 %v1075, %v977
        %v1092 = vmul.f32 %v1076, %v979
        %v1093 = vmul.f32 %v1077, %v981
        %v1094 = vadd.f32 %v1078, 0.2548296
        %v1095 = vadd.f32 %v1079, 0.2548296
        %v1096 = vadd.f32 %v1080, 0.2548296
        %v1097 = vadd.f32 %v1081, 0.2548296
        %v1098 = vadd.f32 %v1082, 0.2548296
        %v1099 = vadd.f32 %v1083, 0.2548296
        %v1100 = vadd.f32 %v1084, 0.2548296
        %v1101 = vadd.f32 %v1085, 0.2548296
        %v1102 = vadd.f32 %v1086, 0.2548296
        %v1103 = vadd.f32 %v1087, 0.2548296
        %v1104 = vadd.f32 %v1088, 0.2548296
        %v1105 = vadd.f32 %v1089, 0.2548296
        %v1106 = vadd.f32 %v1090, 0.2548296
        %v1107 = vadd.f32 %v1091, 0.2548296
        %v1108 = vadd.f32 %v1092, 0.2548296
        %v1109 = vadd.f32 %v1093, 0.2548296
        %v1110 = vmul.f32 %v1094, %v951
        %v1111 = vmul.f32 %v1095, %v953
        %v1112 = vmul.f32 %v1096, %v955
        %v1113 = vmul.f32 %v1097, %v957
        %v1114 = vmul.f32 %v1098, %v959
        %v1115 = vmul.f32 %v1099, %v961
        %v1116 = vmul.f32 %v1100, %v963
        %v1117 = vmul.f32 %v1101, %v965
        %v1118 = vmul.f32 %v1102, %v967
        %v1119 = vmul.f32 %v1103, %v969
        %v1120 = vmul.f32 %v1104, %v971
        %v1121 = vmul.f32 %v1105, %v973
        %v1122 = vmul.f32 %v1106, %v975
        %v1123 = vmul.f32 %v1107, %v977
        %v1124 = vmul.f32 %v1108, %v979
        %v1125 = vmul.f32 %v1109, %v981
        %v1126 = vsub.f32 0.0, %v902
        %v1127 = vsub.f32 0.0, %v903
        %v1128 = vsub.f32 0.0, %v904
        %v1129 = vsub.f32 0.0, %v905
        %v1130 = vsub.f32 0.0, %v906
        %v1131 = vsub.f32 0.0, %v907
        %v1132 = vsub.f32 0.0, %v908
        %v1133 = vsub.f32 0.0, %v909
        %v1134 = vsub.f32 0.0, %v910
        %v1135 = vsub.f32 0.0, %v911
        %v1136 = vsub.f32 0.0, %v912
        %v1137 = vsub.f32 0.0, %v913
        %v1138 = vsub.f32 0.0, %v914
        %v1139 = vsub.f32 0.0, %v915
        %v1140 = vsub.f32 0.0, %v916
        %v1141 = vsub.f32 0.0, %v917
        %v1142 = vmul.f32 %v1126, %v902
        %v1143 = vmul.f32 %v1127, %v903
        %v1144 = vmul.f32 %v1128, %v904
        %v1145 = vmul.f32 %v1129, %v905
        %v1146 = vmul.f32 %v1130, %v906
        %v1147 = vmul.f32 %v1131, %v907
        %v1148 = vmul.f32 %v1132, %v908
        %v1149 = vmul.f32 %v1133, %v909
        %v1150 = vmul.f32 %v1134, %v910
        %v1151 = vmul.f32 %v1135, %v911
        %v1152 = vmul.f32 %v1136, %v912
        %v1153 = vmul.f32 %v1137, %v913
        %v1154 = vmul.f32 %v1138, %v914
        %v1155 = vmul.f32 %v1139, %v915
        %v1156 = vmul.f32 %v1140, %v916
        %v1157 = vmul.f32 %v1141, %v917
        %v1158 = vmul.f32 %v1142, 1.442695
        %v1159 = vpow.pop %v1158
        %v1160 = vmul.f32 %v1143, 1.442695
        %v1161 = vpow.pop %v1160
        %v1162 = vmul.f32 %v1144, 1.442695
        %v1163 = vpow.pop %v1162
        %v1164 = vmul.f32 %v1145, 1.442695
        %v1165 = vpow.pop %v1164
        %v1166 = vmul.f32 %v1146, 1.442695
        %v1167 = vpow.pop %v1166
        %v1168 = vmul.f32 %v1147, 1.442695
        %v1169 = vpow.pop %v1168
        %v1170 = vmul.f32 %v1148, 1.442695
        %v1171 = vpow.pop %v1170
        %v1172 = vmul.f32 %v1149, 1.442695
        %v1173 = vpow.pop %v1172
        %v1174 = vmul.f32 %v1150, 1.442695
        %v1175 = vpow.pop %v1174
        %v1176 = vmul.f32 %v1151, 1.442695
        %v1177 = vpow.pop %v1176
        %v1178 = vmul.f32 %v1152, 1.442695
        %v1179 = vpow.pop %v1178
        %v1180 = vmul.f32 %v1153, 1.442695
        %v1181 = vpow.pop %v1180
        %v1182 = vmul.f32 %v1154, 1.442695
        %v1183 = vpow.pop %v1182
        %v1184 = vmul.f32 %v1155, 1.442695
        %v1185 = vpow.pop %v1184
        %v1186 = vmul.f32 %v1156, 1.442695
        %v1187 = vpow.pop %v1186
        %v1188 = vmul.f32 %v1157, 1.442695
        %v1189 = vpow.pop %v1188
        %v1190 = vmul.f32 %v1110, %v1159
        %v1191 = vmul.f32 %v1111, %v1161
        %v1192 = vmul.f32 %v1112, %v1163
        %v1193 = vmul.f32 %v1113, %v1165
        %v1194 = vmul.f32 %v1114, %v1167
        %v1195 = vmul.f32 %v1115, %v1169
        %v1196 = vmul.f32 %v1116, %v1171
        %v1197 = vmul.f32 %v1117, %v1173
        %v1198 = vmul.f32 %v1118, %v1175
        %v1199 = vmul.f32 %v1119, %v1177
        %v1200 = vmul.f32 %v1120, %v1179
        %v1201 = vmul.f32 %v1121, %v1181
        %v1202 = vmul.f32 %v1122, %v1183
        %v1203 = vmul.f32 %v1123, %v1185
        %v1204 = vmul.f32 %v1124, %v1187
        %v1205 = vmul.f32 %v1125, %v1189
        %v1206 = vsub.f32 1.0, %v1190
        %v1207 = vsub.f32 1.0, %v1191
        %v1208 = vsub.f32 1.0, %v1192
        %v1209 = vsub.f32 1.0, %v1193
        %v1210 = vsub.f32 1.0, %v1194
        %v1211 = vsub.f32 1.0, %v1195
        %v1212 = vsub.f32 1.0, %v1196
        %v1213 = vsub.f32 1.0, %v1197
        %v1214 = vsub.f32 1.0, %v1198
        %v1215 = vsub.f32 1.0, %v1199
        %v1216 = vsub.f32 1.0, %v1200
        %v1217 = vsub.f32 1.0, %v1201
        %v1218 = vsub.f32 1.0, %v1202
        %v1219 = vsub.f32 1.0, %v1203
        %v1220 = vsub.f32 1.0, %v1204
        %v1221 = vsub.f32 1.0, %v1205
        %v1222 = vmul.f32 %v886, %v1206
        %v1223 = vmul.f32 %v887, %v1207
        %v1224 = vmul.f32 %v888, %v1208
        %v1225 = vmul.f32 %v889, %v1209
        %v1226 = vmul.f32 %v890, %v1210
        %v1227 = vmul.f32 %v891, %v1211
        %v1228 = vmul.f32 %v892, %v1212
        %v1229 = vmul.f32 %v893, %v1213
        %v1230 = vmul.f32 %v894, %v1214
        %v1231 = vmul.f32 %v895, %v1215
        %v1232 = vmul.f32 %v896, %v1216
        %v1233 = vmul.f32 %v897, %v1217
        %v1234 = vmul.f32 %v898, %v1218
        %v1235 = vmul.f32 %v899, %v1219
        %v1236 = vmul.f32 %v900, %v1220
        %v1237 = vmul.f32 %v901, %v1221
        %v1238 = vadd.f32 %v1222, 1.0
        %v1239 = vadd.f32 %v1223, 1.0
        %v1240 = vadd.f32 %v1224, 1.0
        %v1241 = vadd.f32 %v1225, 1.0
        %v1242 = vadd.f32 %v1226, 1.0
        %v1243 = vadd.f32 %v1227, 1.0
        %v1244 = vadd.f32 %v1228, 1.0
        %v1245 = vadd.f32 %v1229, 1.0
        %v1246 = vadd.f32 %v1230, 1.0
        %v1247 = vadd.f32 %v1231, 1.0
        %v1248 = vadd.f32 %v1232, 1.0
        %v1249 = vadd.f32 %v1233, 1.0
        %v1250 = vadd.f32 %v1234, 1.0
        %v1251 = vadd.f32 %v1235, 1.0
        %v1252 = vadd.f32 %v1236, 1.0
        %v1253 = vadd.f32 %v1237, 1.0
        %v1254 = vmul.f32 %v838, %v1238
        %v1255 = vmul.f32 %v839, %v1239
        %v1256 = vmul.f32 %v840, %v1240
        %v1257 = vmul.f32 %v841, %v1241
        %v1258 = vmul.f32 %v842, %v1242
        %v1259 = vmul.f32 %v843, %v1243
        %v1260 = vmul.f32 %v844, %v1244
        %v1261 = vmul.f32 %v845, %v1245
        %v1262 = vmul.f32 %v846, %v1246
        %v1263 = vmul.f32 %v847, %v1247
        %v1264 = vmul.f32 %v848, %v1248
        %v1265 = vmul.f32 %v849, %v1249
        %v1266 = vmul.f32 %v850, %v1250
        %v1267 = vmul.f32 %v851, %v1251
        %v1268 = vmul.f32 %v852, %v1252
        %v1269 = vmul.f32 %v853, %v1253
        %s1270 = scalar_lea.vmem [#allocation5], 16
        %v1271 = vld [vmem:[%s1270] sm:$0xff]
        %v1272 = vld [vmem:[%s1270 + $0x8] sm:$0xff]
        %1273 = vset.pattern.permute.xlu0 1
        %1274 = vperm.xlu0 %1273, %v276
        %v1275 = vpop.permute.xlu0 %1274
        %1277 = vset.pattern.permute.xlu0 1
        %1278 = vperm.xlu0 %1277, %v277
        %v1279 = vpop.permute.xlu0 %1278
        %v1282 = vsel %vm523, %v1271, 0
        %v1285 = vsel %vm523, %v1272, 0
        %1287 = vmatprep.subr.mxu0 0.0
        %1288 = vmatpush1.msra.mxu0 0.0
        %1289 = vmatprep.subr.mxu0 0.0
        %1290 = vmatpush1.msra.mxu0 0.0
        %1291 = vmatprep.subr.mxu0 0.0
        %1292 = vmatpush1.msra.mxu0 0.0
        %1293 = vmatprep.subr.mxu0 0.0
        %1294 = vmatpush1.msra.mxu0 0.0
        %1295 = vmatprep.subr.mxu0 0.0
        %1296 = vmatpush1.msra.mxu0 0.0
        %1297 = vmatprep.subr.mxu0 0.0
        %1298 = vmatpush1.msra.mxu0 0.0
        %1299 = vmatprep.subr.mxu0 0.0
        %1300 = vmatpush1.msra.mxu0 0.0
        %1301 = vmatprep.subr.mxu0 0.0
        %1302 = vmatpush1.msra.mxu0 0.0
        %1303 = vmatprep.subr.mxu0 0.0
        %1304 = vmatpush1.msra.mxu0 0.0
        %1305 = vmatprep.subr.mxu0 0.0
        %1306 = vmatpush1.msra.mxu0 0.0
        %1307 = vmatprep.subr.mxu0 0.0
        %1308 = vmatpush1.msra.mxu0 0.0
        %1309 = vmatprep.subr.mxu0 0.0
        %1310 = vmatpush1.msra.mxu0 0.0
        %1311 = vmatprep.subr.mxu0 0.0
        %1312 = vmatpush1.msra.mxu0 0.0
        %1313 = vmatprep.subr.mxu0 0.0
        %1314 = vmatpush1.msra.mxu0 0.0
        %1315 = vmatprep.subr.mxu0 %v1263
        %1316 = vmatpush1.msra.mxu0 %v1262
        %1317 = vmatprep.subr.mxu0 %v1255
        %1318 = vmatpush1.msra.mxu0 %v1254
        %1319 = vmatprep.subr.mxu0 0.0
        %1320 = vmatpush2.msra.mxu0 0.0
        %1321 = vmatprep.subr.mxu0 0.0
        %1322 = vmatpush2.msra.mxu0 0.0
        %1323 = vmatprep.subr.mxu0 0.0
        %1324 = vmatpush2.msra.mxu0 0.0
        %1325 = vmatprep.subr.mxu0 0.0
        %1326 = vmatpush2.msra.mxu0 0.0
        %1327 = vmatprep.subr.mxu0 0.0
        %1328 = vmatpush2.msra.mxu0 0.0
        %1329 = vmatprep.subr.mxu0 0.0
        %1330 = vmatpush2.msra.mxu0 0.0
        %1331 = vmatprep.subr.mxu0 0.0
        %1332 = vmatpush2.msra.mxu0 0.0
        %1333 = vmatprep.subr.mxu0 0.0
        %1334 = vmatpush2.msra.mxu0 0.0
        %1335 = vmatprep.subr.mxu0 0.0
        %1336 = vmatpush2.msra.mxu0 0.0
        %1337 = vmatprep.subr.mxu0 0.0
        %1338 = vmatpush2.msra.mxu0 0.0
        %1339 = vmatprep.subr.mxu0 0.0
        %1340 = vmatpush2.msra.mxu0 0.0
        %1341 = vmatprep.subr.mxu0 0.0
        %1342 = vmatpush2.msra.mxu0 0.0
        %1343 = vmatprep.subr.mxu0 0.0
        %1344 = vmatpush2.msra.mxu0 0.0
        %1345 = vmatprep.subr.mxu0 0.0
        %1346 = vmatpush2.msra.mxu0 0.0
        %1347 = vmatprep.subr.mxu0 0.0
        %1348 = vmatpush2.msra.mxu0 0.0
        %1349 = vmatprep.subr.mxu0 0.0
        %1350 = vmatpush2.msra.mxu0 0.0
        %1351 = vmatprep.mubr.f32.mxu0 0.0
        %1352 = vmatmul.mubr.f32.gmra.mxu0 %v1282
        %v1353 = vpop.f32.mrf.mxu0
        %v1354 = vadd.f32 %v1275, %v1353
        %v1355 = vpop.f32.mrf.mxu0
        %v1356 = vadd.f32 %v1275, %v1355
        %1357 = vmatprep.mubr.f32.mxu0 0.0
        %1358 = vmatmul.mubr.f32.gmra.mxu0 %v1285
        %v1359 = vpop.f32.mrf.mxu0
        %v1360 = vadd.f32 %v1279, %v1359
        %v1361 = vpop.f32.mrf.mxu0
        %v1362 = vadd.f32 %v1279, %v1361
        %1363 = vdwg.mxu0
        %1364 = vmatprep.subr.mxu0 0.0
        %1365 = vmatpush1.msra.mxu0 0.0
        %1366 = vmatprep.subr.mxu0 0.0
        %1367 = vmatpush1.msra.mxu0 0.0
        %1368 = vmatprep.subr.mxu0 0.0
        %1369 = vmatpush1.msra.mxu0 0.0
        %1370 = vmatprep.subr.mxu0 0.0
        %1371 = vmatpush1.msra.mxu0 0.0
        %1372 = vmatprep.subr.mxu0 0.0
        %1373 = vmatpush1.msra.mxu0 0.0
        %1374 = vmatprep.subr.mxu0 0.0
        %1375 = vmatpush1.msra.mxu0 0.0
        %1376 = vmatprep.subr.mxu0 0.0
        %1377 = vmatpush1.msra.mxu0 0.0
        %1378 = vmatprep.subr.mxu0 0.0
        %1379 = vmatpush1.msra.mxu0 0.0
        %1380 = vmatprep.subr.mxu0 0.0
        %1381 = vmatpush1.msra.mxu0 0.0
        %1382 = vmatprep.subr.mxu0 0.0
        %1383 = vmatpush1.msra.mxu0 0.0
        %1384 = vmatprep.subr.mxu0 0.0
        %1385 = vmatpush1.msra.mxu0 0.0
        %1386 = vmatprep.subr.mxu0 0.0
        %1387 = vmatpush1.msra.mxu0 0.0
        %1388 = vmatprep.subr.mxu0 0.0
        %1389 = vmatpush1.msra.mxu0 0.0
        %1390 = vmatprep.subr.mxu0 0.0
        %1391 = vmatpush1.msra.mxu0 0.0
        %1392 = vmatprep.subr.mxu0 %v1265
        %1393 = vmatpush1.msra.mxu0 %v1264
        %1394 = vmatprep.subr.mxu0 %v1257
        %1395 = vmatpush1.msra.mxu0 %v1256
        %1396 = vmatprep.subr.mxu0 0.0
        %1397 = vmatpush2.msra.mxu0 0.0
        %1398 = vmatprep.subr.mxu0 0.0
        %1399 = vmatpush2.msra.mxu0 0.0
        %1400 = vmatprep.subr.mxu0 0.0
        %1401 = vmatpush2.msra.mxu0 0.0
        %1402 = vmatprep.subr.mxu0 0.0
        %1403 = vmatpush2.msra.mxu0 0.0
        %1404 = vmatprep.subr.mxu0 0.0
        %1405 = vmatpush2.msra.mxu0 0.0
        %1406 = vmatprep.subr.mxu0 0.0
        %1407 = vmatpush2.msra.mxu0 0.0
        %1408 = vmatprep.subr.mxu0 0.0
        %1409 = vmatpush2.msra.mxu0 0.0
        %1410 = vmatprep.subr.mxu0 0.0
        %1411 = vmatpush2.msra.mxu0 0.0
        %1412 = vmatprep.subr.mxu0 0.0
        %1413 = vmatpush2.msra.mxu0 0.0
        %1414 = vmatprep.subr.mxu0 0.0
        %1415 = vmatpush2.msra.mxu0 0.0
        %1416 = vmatprep.subr.mxu0 0.0
        %1417 = vmatpush2.msra.mxu0 0.0
        %1418 = vmatprep.subr.mxu0 0.0
        %1419 = vmatpush2.msra.mxu0 0.0
        %1420 = vmatprep.subr.mxu0 0.0
        %1421 = vmatpush2.msra.mxu0 0.0
        %1422 = vmatprep.subr.mxu0 0.0
        %1423 = vmatpush2.msra.mxu0 0.0
        %1424 = vmatprep.subr.mxu0 0.0
        %1425 = vmatpush2.msra.mxu0 0.0
        %1426 = vmatprep.subr.mxu0 0.0
        %1427 = vmatpush2.msra.mxu0 0.0
        %1428 = vmatprep.mubr.f32.mxu0 0.0
        %1429 = vmatmul.mubr.f32.gmra.mxu0 %v1282
        %v1430 = vpop.f32.mrf.mxu0
        %v1431 = vadd.f32 %v1275, %v1430
        %v1432 = vpop.f32.mrf.mxu0
        %v1433 = vadd.f32 %v1275, %v1432
        %1434 = vmatprep.mubr.f32.mxu0 0.0
        %1435 = vmatmul.mubr.f32.gmra.mxu0 %v1285
        %v1436 = vpop.f32.mrf.mxu0
        %v1437 = vadd.f32 %v1279, %v1436
        %v1438 = vpop.f32.mrf.mxu0
        %v1439 = vadd.f32 %v1279, %v1438
        %1440 = vdwg.mxu0
        %1441 = vmatprep.subr.mxu0 0.0
        %1442 = vmatpush1.msra.mxu0 0.0
        %1443 = vmatprep.subr.mxu0 0.0
        %1444 = vmatpush1.msra.mxu0 0.0
        %1445 = vmatprep.subr.mxu0 0.0
        %1446 = vmatpush1.msra.mxu0 0.0
        %1447 = vmatprep.subr.mxu0 0.0
        %1448 = vmatpush1.msra.mxu0 0.0
        %1449 = vmatprep.subr.mxu0 0.0
        %1450 = vmatpush1.msra.mxu0 0.0
        %1451 = vmatprep.subr.mxu0 0.0
        %1452 = vmatpush1.msra.mxu0 0.0
        %1453 = vmatprep.subr.mxu0 0.0
        %1454 = vmatpush1.msra.mxu0 0.0
        %1455 = vmatprep.subr.mxu0 0.0
        %1456 = vmatpush1.msra.mxu0 0.0
        %1457 = vmatprep.subr.mxu0 0.0
        %1458 = vmatpush1.msra.mxu0 0.0
        %1459 = vmatprep.subr.mxu0 0.0
        %1460 = vmatpush1.msra.mxu0 0.0
        %1461 = vmatprep.subr.mxu0 0.0
        %1462 = vmatpush1.msra.mxu0 0.0
        %1463 = vmatprep.subr.mxu0 0.0
        %1464 = vmatpush1.msra.mxu0 0.0
        %1465 = vmatprep.subr.mxu0 0.0
        %1466 = vmatpush1.msra.mxu0 0.0
        %1467 = vmatprep.subr.mxu0 0.0
        %1468 = vmatpush1.msra.mxu0 0.0
        %1469 = vmatprep.subr.mxu0 %v1267
        %1470 = vmatpush1.msra.mxu0 %v1266
        %1471 = vmatprep.subr.mxu0 %v1259
        %1472 = vmatpush1.msra.mxu0 %v1258
        %1473 = vmatprep.subr.mxu0 0.0
        %1474 = vmatpush2.msra.mxu0 0.0
        %1475 = vmatprep.subr.mxu0 0.0
        %1476 = vmatpush2.msra.mxu0 0.0
        %1477 = vmatprep.subr.mxu0 0.0
        %1478 = vmatpush2.msra.mxu0 0.0
        %1479 = vmatprep.subr.mxu0 0.0
        %1480 = vmatpush2.msra.mxu0 0.0
        %1481 = vmatprep.subr.mxu0 0.0
        %1482 = vmatpush2.msra.mxu0 0.0
        %1483 = vmatprep.subr.mxu0 0.0
        %1484 = vmatpush2.msra.mxu0 0.0
        %1485 = vmatprep.subr.mxu0 0.0
        %1486 = vmatpush2.msra.mxu0 0.0
        %1487 = vmatprep.subr.mxu0 0.0
        %1488 = vmatpush2.msra.mxu0 0.0
        %1489 = vmatprep.subr.mxu0 0.0
        %1490 = vmatpush2.msra.mxu0 0.0
        %1491 = vmatprep.subr.mxu0 0.0
        %1492 = vmatpush2.msra.mxu0 0.0
        %1493 = vmatprep.subr.mxu0 0.0
        %1494 = vmatpush2.msra.mxu0 0.0
        %1495 = vmatprep.subr.mxu0 0.0
        %1496 = vmatpush2.msra.mxu0 0.0
        %1497 = vmatprep.subr.mxu0 0.0
        %1498 = vmatpush2.msra.mxu0 0.0
        %1499 = vmatprep.subr.mxu0 0.0
        %1500 = vmatpush2.msra.mxu0 0.0
        %1501 = vmatprep.subr.mxu0 0.0
        %1502 = vmatpush2.msra.mxu0 0.0
        %1503 = vmatprep.subr.mxu0 0.0
        %1504 = vmatpush2.msra.mxu0 0.0
        %1505 = vmatprep.mubr.f32.mxu0 0.0
        %1506 = vmatmul.mubr.f32.gmra.mxu0 %v1282
        %v1507 = vpop.f32.mrf.mxu0
        %v1508 = vadd.f32 %v1275, %v1507
        %v1509 = vpop.f32.mrf.mxu0
        %v1510 = vadd.f32 %v1275, %v1509
        %1511 = vmatprep.mubr.f32.mxu0 0.0
        %1512 = vmatmul.mubr.f32.gmra.mxu0 %v1285
        %v1513 = vpop.f32.mrf.mxu0
        %v1514 = vadd.f32 %v1279, %v1513
        %v1515 = vpop.f32.mrf.mxu0
        %v1516 = vadd.f32 %v1279, %v1515
        %1517 = vdwg.mxu0
        %1518 = vmatprep.subr.mxu0 0.0
        %1519 = vmatpush1.msra.mxu0 0.0
        %1520 = vmatprep.subr.mxu0 0.0
        %1521 = vmatpush1.msra.mxu0 0.0
        %1522 = vmatprep.subr.mxu0 0.0
        %1523 = vmatpush1.msra.mxu0 0.0
        %1524 = vmatprep.subr.mxu0 0.0
        %1525 = vmatpush1.msra.mxu0 0.0
        %1526 = vmatprep.subr.mxu0 0.0
        %1527 = vmatpush1.msra.mxu0 0.0
        %1528 = vmatprep.subr.mxu0 0.0
        %1529 = vmatpush1.msra.mxu0 0.0
        %1530 = vmatprep.subr.mxu0 0.0
        %1531 = vmatpush1.msra.mxu0 0.0
        %1532 = vmatprep.subr.mxu0 0.0
        %1533 = vmatpush1.msra.mxu0 0.0
        %1534 = vmatprep.subr.mxu0 0.0
        %1535 = vmatpush1.msra.mxu0 0.0
        %1536 = vmatprep.subr.mxu0 0.0
        %1537 = vmatpush1.msra.mxu0 0.0
        %1538 = vmatprep.subr.mxu0 0.0
        %1539 = vmatpush1.msra.mxu0 0.0
        %1540 = vmatprep.subr.mxu0 0.0
        %1541 = vmatpush1.msra.mxu0 0.0
        %1542 = vmatprep.subr.mxu0 0.0
        %1543 = vmatpush1.msra.mxu0 0.0
        %1544 = vmatprep.subr.mxu0 0.0
        %1545 = vmatpush1.msra.mxu0 0.0
        %1546 = vmatprep.subr.mxu0 %v1269
        %1547 = vmatpush1.msra.mxu0 %v1268
        %1548 = vmatprep.subr.mxu0 %v1261
        %1549 = vmatpush1.msra.mxu0 %v1260
        %1550 = vmatprep.subr.mxu0 0.0
        %1551 = vmatpush2.msra.mxu0 0.0
        %1552 = vmatprep.subr.mxu0 0.0
        %1553 = vmatpush2.msra.mxu0 0.0
        %1554 = vmatprep.subr.mxu0 0.0
        %1555 = vmatpush2.msra.mxu0 0.0
        %1556 = vmatprep.subr.mxu0 0.0
        %1557 = vmatpush2.msra.mxu0 0.0
        %1558 = vmatprep.subr.mxu0 0.0
        %1559 = vmatpush2.msra.mxu0 0.0
        %1560 = vmatprep.subr.mxu0 0.0
        %1561 = vmatpush2.msra.mxu0 0.0
        %1562 = vmatprep.subr.mxu0 0.0
        %1563 = vmatpush2.msra.mxu0 0.0
        %1564 = vmatprep.subr.mxu0 0.0
        %1565 = vmatpush2.msra.mxu0 0.0
        %1566 = vmatprep.subr.mxu0 0.0
        %1567 = vmatpush2.msra.mxu0 0.0
        %1568 = vmatprep.subr.mxu0 0.0
        %1569 = vmatpush2.msra.mxu0 0.0
        %1570 = vmatprep.subr.mxu0 0.0
        %1571 = vmatpush2.msra.mxu0 0.0
        %1572 = vmatprep.subr.mxu0 0.0
        %1573 = vmatpush2.msra.mxu0 0.0
        %1574 = vmatprep.subr.mxu0 0.0
        %1575 = vmatpush2.msra.mxu0 0.0
        %1576 = vmatprep.subr.mxu0 0.0
        %1577 = vmatpush2.msra.mxu0 0.0
        %1578 = vmatprep.subr.mxu0 0.0
        %1579 = vmatpush2.msra.mxu0 0.0
        %1580 = vmatprep.subr.mxu0 0.0
        %1581 = vmatpush2.msra.mxu0 0.0
        %1582 = vmatprep.mubr.f32.mxu0 0.0
        %1583 = vmatmul.mubr.f32.gmra.mxu0 %v1282
        %v1584 = vpop.f32.mrf.mxu0
        %v1585 = vadd.f32 %v1275, %v1584
        %v1586 = vpop.f32.mrf.mxu0
        %v1587 = vadd.f32 %v1275, %v1586
        %1588 = vmatprep.mubr.f32.mxu0 0.0
        %1589 = vmatmul.mubr.f32.gmra.mxu0 %v1285
        %v1590 = vpop.f32.mrf.mxu0
        %v1591 = vadd.f32 %v1279, %v1590
        %v1592 = vpop.f32.mrf.mxu0
        %v1593 = vadd.f32 %v1279, %v1592
        %1594 = vdwg.mxu0
        %v1595 = vadd.f32 %v278, %v1354
        %v1596 = vadd.f32 %v279, %v1360
        %v1597 = vadd.f32 %v280, %v1356
        %v1598 = vadd.f32 %v281, %v1362
        %v1599 = vadd.f32 %v282, %v1431
        %v1600 = vadd.f32 %v283, %v1437
        %v1601 = vadd.f32 %v284, %v1433
        %v1602 = vadd.f32 %v285, %v1439
        %v1603 = vadd.f32 %v286, %v1508
        %v1604 = vadd.f32 %v287, %v1514
        %v1605 = vadd.f32 %v288, %v1510
        %v1606 = vadd.f32 %v289, %v1516
        %v1607 = vadd.f32 %v290, %v1585
        %v1608 = vadd.f32 %v291, %v1591
        %v1609 = vadd.f32 %v292, %v1587
        %v1610 = vadd.f32 %v293, %v1593
        %1611 = vadd.xlane.f32.xlu0 %v1595
        %v1612 = vpop.xlane.xlu0 %1611
        %1613 = vadd.xlane.f32.xlu0 %v1596
        %v1614 = vpop.xlane.xlu0 %1613
        %1615 = vadd.xlane.f32.xlu0 %v1597
        %v1616 = vpop.xlane.xlu0 %1615
        %1617 = vadd.xlane.f32.xlu0 %v1598
        %v1618 = vpop.xlane.xlu0 %1617
        %1619 = vadd.xlane.f32.xlu0 %v1599
        %v1620 = vpop.xlane.xlu0 %1619
        %1621 = vadd.xlane.f32.xlu0 %v1600
        %v1622 = vpop.xlane.xlu0 %1621
        %1623 = vadd.xlane.f32.xlu0 %v1601
        %v1624 = vpop.xlane.xlu0 %1623
        %1625 = vadd.xlane.f32.xlu0 %v1602
        %v1626 = vpop.xlane.xlu0 %1625
        %1627 = vadd.xlane.f32.xlu0 %v1603
        %v1628 = vpop.xlane.xlu0 %1627
        %1629 = vadd.xlane.f32.xlu0 %v1604
        %v1630 = vpop.xlane.xlu0 %1629
        %1631 = vadd.xlane.f32.xlu0 %v1605
        %v1632 = vpop.xlane.xlu0 %1631
        %1633 = vadd.xlane.f32.xlu0 %v1606
        %v1634 = vpop.xlane.xlu0 %1633
        %1635 = vadd.xlane.f32.xlu0 %v1607
        %v1636 = vpop.xlane.xlu0 %1635
        %1637 = vadd.xlane.f32.xlu0 %v1608
        %v1638 = vpop.xlane.xlu0 %1637
        %1639 = vadd.xlane.f32.xlu0 %v1609
        %v1640 = vpop.xlane.xlu0 %1639
        %1641 = vadd.xlane.f32.xlu0 %v1610
        %v1642 = vpop.xlane.xlu0 %1641
        %v1643 = vmul.f32 %v1612, %v326
        %v1644 = vmul.f32 %v1614, %v326
        %v1645 = vmul.f32 %v1616, %v326
        %v1646 = vmul.f32 %v1618, %v326
        %v1647 = vmul.f32 %v1620, %v326
        %v1648 = vmul.f32 %v1622, %v326
        %v1649 = vmul.f32 %v1624, %v326
        %v1650 = vmul.f32 %v1626, %v326
        %v1651 = vmul.f32 %v1628, %v326
        %v1652 = vmul.f32 %v1630, %v326
        %v1653 = vmul.f32 %v1632, %v326
        %v1654 = vmul.f32 %v1634, %v326
        %v1655 = vmul.f32 %v1636, %v326
        %v1656 = vmul.f32 %v1638, %v326
        %v1657 = vmul.f32 %v1640, %v326
        %v1658 = vmul.f32 %v1642, %v326
        %v1659 = vsub.f32 %v1595, %v1643
        %v1660 = vsub.f32 %v1596, %v1644
        %v1661 = vsub.f32 %v1597, %v1645
        %v1662 = vsub.f32 %v1598, %v1646
        %v1663 = vsub.f32 %v1599, %v1647
        %v1664 = vsub.f32 %v1600, %v1648
        %v1665 = vsub.f32 %v1601, %v1649
        %v1666 = vsub.f32 %v1602, %v1650
        %v1667 = vsub.f32 %v1603, %v1651
        %v1668 = vsub.f32 %v1604, %v1652
        %v1669 = vsub.f32 %v1605, %v1653
        %v1670 = vsub.f32 %v1606, %v1654
        %v1671 = vsub.f32 %v1607, %v1655
        %v1672 = vsub.f32 %v1608, %v1656
        %v1673 = vsub.f32 %v1609, %v1657
        %v1674 = vsub.f32 %v1610, %v1658
        %v1675 = vmul.f32 %v1659, %v1659
        %v1676 = vmul.f32 %v1660, %v1660
        %v1677 = vmul.f32 %v1661, %v1661
        %v1678 = vmul.f32 %v1662, %v1662
        %v1679 = vmul.f32 %v1663, %v1663
        %v1680 = vmul.f32 %v1664, %v1664
        %v1681 = vmul.f32 %v1665, %v1665
        %v1682 = vmul.f32 %v1666, %v1666
        %v1683 = vmul.f32 %v1667, %v1667
        %v1684 = vmul.f32 %v1668, %v1668
        %v1685 = vmul.f32 %v1669, %v1669
        %v1686 = vmul.f32 %v1670, %v1670
        %v1687 = vmul.f32 %v1671, %v1671
        %v1688 = vmul.f32 %v1672, %v1672
        %v1689 = vmul.f32 %v1673, %v1673
        %v1690 = vmul.f32 %v1674, %v1674
        %1691 = vadd.xlane.f32.xlu0 %v1675
        %v1692 = vpop.xlane.xlu0 %1691
        %1693 = vadd.xlane.f32.xlu0 %v1676
        %v1694 = vpop.xlane.xlu0 %1693
        %1695 = vadd.xlane.f32.xlu0 %v1677
        %v1696 = vpop.xlane.xlu0 %1695
        %1697 = vadd.xlane.f32.xlu0 %v1678
        %v1698 = vpop.xlane.xlu0 %1697
        %1699 = vadd.xlane.f32.xlu0 %v1679
        %v1700 = vpop.xlane.xlu0 %1699
        %1701 = vadd.xlane.f32.xlu0 %v1680
        %v1702 = vpop.xlane.xlu0 %1701
        %1703 = vadd.xlane.f32.xlu0 %v1681
        %v1704 = vpop.xlane.xlu0 %1703
        %1705 = vadd.xlane.f32.xlu0 %v1682
        %v1706 = vpop.xlane.xlu0 %1705
        %1707 = vadd.xlane.f32.xlu0 %v1683
        %v1708 = vpop.xlane.xlu0 %1707
        %1709 = vadd.xlane.f32.xlu0 %v1684
        %v1710 = vpop.xlane.xlu0 %1709
        %1711 = vadd.xlane.f32.xlu0 %v1685
        %v1712 = vpop.xlane.xlu0 %1711
        %1713 = vadd.xlane.f32.xlu0 %v1686
        %v1714 = vpop.xlane.xlu0 %1713
        %1715 = vadd.xlane.f32.xlu0 %v1687
        %v1716 = vpop.xlane.xlu0 %1715
        %1717 = vadd.xlane.f32.xlu0 %v1688
        %v1718 = vpop.xlane.xlu0 %1717
        %1719 = vadd.xlane.f32.xlu0 %v1689
        %v1720 = vpop.xlane.xlu0 %1719
        %1721 = vadd.xlane.f32.xlu0 %v1690
        %v1722 = vpop.xlane.xlu0 %1721
        %v1723 = vmul.f32 %v1692, %v326
        %v1724 = vmul.f32 %v1694, %v326
        %v1725 = vmul.f32 %v1696, %v326
        %v1726 = vmul.f32 %v1698, %v326
        %v1727 = vmul.f32 %v1700, %v326
        %v1728 = vmul.f32 %v1702, %v326
        %v1729 = vmul.f32 %v1704, %v326
        %v1730 = vmul.f32 %v1706, %v326
        %v1731 = vmul.f32 %v1708, %v326
        %v1732 = vmul.f32 %v1710, %v326
        %v1733 = vmul.f32 %v1712, %v326
        %v1734 = vmul.f32 %v1714, %v326
        %v1735 = vmul.f32 %v1716, %v326
        %v1736 = vmul.f32 %v1718, %v326
        %v1737 = vmul.f32 %v1720, %v326
        %v1738 = vmul.f32 %v1722, %v326
        %v1739 = vadd.f32 %v1723, 1e-05
        %v1740 = vadd.f32 %v1724, 1e-05
        %v1741 = vadd.f32 %v1725, 1e-05
        %v1742 = vadd.f32 %v1726, 1e-05
        %v1743 = vadd.f32 %v1727, 1e-05
        %v1744 = vadd.f32 %v1728, 1e-05
        %v1745 = vadd.f32 %v1729, 1e-05
        %v1746 = vadd.f32 %v1730, 1e-05
        %v1747 = vadd.f32 %v1731, 1e-05
        %v1748 = vadd.f32 %v1732, 1e-05
        %v1749 = vadd.f32 %v1733, 1e-05
        %v1750 = vadd.f32 %v1734, 1e-05
        %v1751 = vadd.f32 %v1735, 1e-05
        %v1752 = vadd.f32 %v1736, 1e-05
        %v1753 = vadd.f32 %v1737, 1e-05
        %v1754 = vadd.f32 %v1738, 1e-05
        %v1755 = vrsqrt.pop %v1739
        %v1756 = vrsqrt.pop %v1740
        %v1757 = vrsqrt.pop %v1741
        %v1758 = vrsqrt.pop %v1742
        %v1759 = vrsqrt.pop %v1743
        %v1760 = vrsqrt.pop %v1744
        %v1761 = vrsqrt.pop %v1745
        %v1762 = vrsqrt.pop %v1746
        %v1763 = vrsqrt.pop %v1747
        %v1764 = vrsqrt.pop %v1748
        %v1765 = vrsqrt.pop %v1749
        %v1766 = vrsqrt.pop %v1750
        %v1767 = vrsqrt.pop %v1751
        %v1768 = vrsqrt.pop %v1752
        %v1769 = vrsqrt.pop %v1753
        %v1770 = vrsqrt.pop %v1754
        %v1771 = vmul.f32 %v1659, %v1755
        %v1772 = vmul.f32 %v1660, %v1756
        %v1773 = vmul.f32 %v1661, %v1757
        %v1774 = vmul.f32 %v1662, %v1758
        %v1775 = vmul.f32 %v1663, %v1759
        %v1776 = vmul.f32 %v1664, %v1760
        %v1777 = vmul.f32 %v1665, %v1761
        %v1778 = vmul.f32 %v1666, %v1762
        %v1779 = vmul.f32 %v1667, %v1763
        %v1780 = vmul.f32 %v1668, %v1764
        %v1781 = vmul.f32 %v1669, %v1765
        %v1782 = vmul.f32 %v1670, %v1766
        %v1783 = vmul.f32 %v1671, %v1767
        %v1784 = vmul.f32 %v1672, %v1768
        %v1785 = vmul.f32 %v1673, %v1769
        %v1786 = vmul.f32 %v1674, %v1770
        %v1787 = vlaneseq
        %v1788 = vshrl.u32 %v1787, 7
        %v1789 = vsub.s32 2, %v1788
        %v1790 = vrot.slane %v275, %v1789
        %v1791 = vmul.f32 %v1771, %v1790
        %v1792 = vmul.f32 %v1772, %v1790
        %v1793 = vmul.f32 %v1773, %v1790
        %v1794 = vmul.f32 %v1774, %v1790
        %v1795 = vmul.f32 %v1775, %v1790
        %v1796 = vmul.f32 %v1776, %v1790
        %v1797 = vmul.f32 %v1777, %v1790
        %v1798 = vmul.f32 %v1778, %v1790
        %v1799 = vmul.f32 %v1779, %v1790
        %v1800 = vmul.f32 %v1780, %v1790
        %v1801 = vmul.f32 %v1781, %v1790
        %v1802 = vmul.f32 %v1782, %v1790
        %v1803 = vmul.f32 %v1783, %v1790
        %v1804 = vmul.f32 %v1784, %v1790
        %v1805 = vmul.f32 %v1785, %v1790
        %v1806 = vmul.f32 %v1786, %v1790
        %v1807 = vlaneseq
        %v1808 = vshrl.u32 %v1807, 7
        %v1809 = vsub.s32 3, %v1808
        %v1810 = vrot.slane %v275, %v1809
        %v1811 = vadd.f32 %v1791, %v1810
        %v1812 = vadd.f32 %v1792, %v1810
        %v1813 = vadd.f32 %v1793, %v1810
        %v1814 = vadd.f32 %v1794, %v1810
        %v1815 = vadd.f32 %v1795, %v1810
        %v1816 = vadd.f32 %v1796, %v1810
        %v1817 = vadd.f32 %v1797, %v1810
        %v1818 = vadd.f32 %v1798, %v1810
        %v1819 = vadd.f32 %v1799, %v1810
        %v1820 = vadd.f32 %v1800, %v1810
        %v1821 = vadd.f32 %v1801, %v1810
        %v1822 = vadd.f32 %v1802, %v1810
        %v1823 = vadd.f32 %v1803, %v1810
        %v1824 = vadd.f32 %v1804, %v1810
        %v1825 = vadd.f32 %v1805, %v1810
        %v1826 = vadd.f32 %v1806, %v1810
        %v1827 = vld [vmem:[#allocation7] sm:$0xff]
        %v1828 = vld [vmem:[#allocation7 + $0x8] sm:$0xff]
        %v1829 = vld [vmem:[#allocation7 + $0x10] sm:$0xff]
        %v1830 = vld [vmem:[#allocation7 + $0x18] sm:$0xff]
        %v1831 = vld [vmem:[#allocation7 + $0x20] sm:$0xff]
        %v1832 = vld [vmem:[#allocation7 + $0x28] sm:$0xff]
        %v1833 = vld [vmem:[#allocation7 + $0x30] sm:$0xff]
        %v1834 = vld [vmem:[#allocation7 + $0x38] sm:$0xff]
        %v1835 = vld [vmem:[#allocation7 + $0x40] sm:$0xff]
        %v1836 = vld [vmem:[#allocation7 + $0x48] sm:$0xff]
        %v1837 = vld [vmem:[#allocation7 + $0x50] sm:$0xff]
        %v1838 = vld [vmem:[#allocation7 + $0x58] sm:$0xff]
        %v1839 = vld [vmem:[#allocation7 + $0x60] sm:$0xff]
        %v1840 = vld [vmem:[#allocation7 + $0x68] sm:$0xff]
        %v1841 = vld [vmem:[#allocation7 + $0x70] sm:$0xff]
        %v1842 = vld [vmem:[#allocation7 + $0x78] sm:$0xff]
        %v1843 = vlaneseq
        %v1844 = vshrl.u32 %v1843, 7
        %v1845 = vsub.s32 4, %v1844
        %v1846 = vrot.slane %v275, %v1845
        %1847 = vmatprep.subr.mxu0 0.0
        %1848 = vmatpush1.msra.mxu0 %v1842
        %1849 = vmatprep.subr.mxu0 0.0
        %1850 = vmatpush1.msra.mxu0 %v1841
        %1851 = vmatprep.subr.mxu0 0.0
        %1852 = vmatpush1.msra.mxu0 %v1840
        %1853 = vmatprep.subr.mxu0 0.0
        %1854 = vmatpush1.msra.mxu0 %v1839
        %1855 = vmatprep.subr.mxu0 0.0
        %1856 = vmatpush1.msra.mxu0 %v1838
        %1857 = vmatprep.subr.mxu0 0.0
        %1858 = vmatpush1.msra.mxu0 %v1837
        %1859 = vmatprep.subr.mxu0 0.0
        %1860 = vmatpush1.msra.mxu0 %v1836
        %1861 = vmatprep.subr.mxu0 0.0
        %1862 = vmatpush1.msra.mxu0 %v1835
        %1863 = vmatprep.subr.mxu0 0.0
        %1864 = vmatpush1.msra.mxu0 %v1834
        %1865 = vmatprep.subr.mxu0 0.0
        %1866 = vmatpush1.msra.mxu0 %v1833
        %1867 = vmatprep.subr.mxu0 0.0
        %1868 = vmatpush1.msra.mxu0 %v1832
        %1869 = vmatprep.subr.mxu0 0.0
        %1870 = vmatpush1.msra.mxu0 %v1831
        %1871 = vmatprep.subr.mxu0 0.0
        %1872 = vmatpush1.msra.mxu0 %v1830
        %1873 = vmatprep.subr.mxu0 0.0
        %1874 = vmatpush1.msra.mxu0 %v1829
        %1875 = vmatprep.subr.mxu0 0.0
        %1876 = vmatpush1.msra.mxu0 %v1828
        %1877 = vmatprep.subr.mxu0 0.0
        %1878 = vmatpush1.msra.mxu0 %v1827
        %1879 = vmatprep.subr.mxu0 0.0
        %1880 = vmatpush2.msra.mxu0 0.0
        %1881 = vmatprep.subr.mxu0 0.0
        %1882 = vmatpush2.msra.mxu0 0.0
        %1883 = vmatprep.subr.mxu0 0.0
        %1884 = vmatpush2.msra.mxu0 0.0
        %1885 = vmatprep.subr.mxu0 0.0
        %1886 = vmatpush2.msra.mxu0 0.0
        %1887 = vmatprep.subr.mxu0 0.0
        %1888 = vmatpush2.msra.mxu0 0.0
        %1889 = vmatprep.subr.mxu0 0.0
        %1890 = vmatpush2.msra.mxu0 0.0
        %1891 = vmatprep.subr.mxu0 0.0
        %1892 = vmatpush2.msra.mxu0 0.0
        %1893 = vmatprep.subr.mxu0 0.0
        %1894 = vmatpush2.msra.mxu0 0.0
        %1895 = vmatprep.subr.mxu0 0.0
        %1896 = vmatpush2.msra.mxu0 0.0
        %1897 = vmatprep.subr.mxu0 0.0
        %1898 = vmatpush2.msra.mxu0 0.0
        %1899 = vmatprep.subr.mxu0 0.0
        %1900 = vmatpush2.msra.mxu0 0.0
        %1901 = vmatprep.subr.mxu0 0.0
        %1902 = vmatpush2.msra.mxu0 0.0
        %1903 = vmatprep.subr.mxu0 0.0
        %1904 = vmatpush2.msra.mxu0 0.0
        %1905 = vmatprep.subr.mxu0 0.0
        %1906 = vmatpush2.msra.mxu0 0.0
        %1907 = vmatprep.subr.mxu0 0.0
        %1908 = vmatpush2.msra.mxu0 0.0
        %1909 = vmatprep.subr.mxu0 0.0
        %1910 = vmatpush2.msra.mxu0 0.0
        %1911 = vmatprep.mubr.f32.mxu0 0.0
        %1912 = vmatmul.mubr.f32.gmra.mxu0 %v1811
        %v1913 = vpop.f32.mrf.mxu0
        %v1914 = vadd.f32 %v1846, %v1913
        %v1915 = vpop.f32.mrf.mxu0
        %1916 = vmatprep.mubr.f32.mxu0 0.0
        %1917 = vmatmul.mubr.f32.gmra.mxu0 %v1812
        %v1918 = vpop.f32.mrf.mxu0
        %v1919 = vadd.f32 %v1846, %v1918
        %v1920 = vpop.f32.mrf.mxu0
        %1921 = vmatprep.mubr.f32.mxu0 0.0
        %1922 = vmatmul.mubr.f32.gmra.mxu0 %v1813
        %v1923 = vpop.f32.mrf.mxu0
        %v1924 = vadd.f32 %v1846, %v1923
        %v1925 = vpop.f32.mrf.mxu0
        %1926 = vmatprep.mubr.f32.mxu0 0.0
        %1927 = vmatmul.mubr.f32.gmra.mxu0 %v1814
        %v1928 = vpop.f32.mrf.mxu0
        %v1929 = vadd.f32 %v1846, %v1928
        %v1930 = vpop.f32.mrf.mxu0
        %1931 = vmatprep.mubr.f32.mxu0 0.0
        %1932 = vmatmul.mubr.f32.gmra.mxu0 %v1815
        %v1933 = vpop.f32.mrf.mxu0
        %v1934 = vadd.f32 %v1846, %v1933
        %v1935 = vpop.f32.mrf.mxu0
        %1936 = vmatprep.mubr.f32.mxu0 0.0
        %1937 = vmatmul.mubr.f32.gmra.mxu0 %v1816
        %v1938 = vpop.f32.mrf.mxu0
        %v1939 = vadd.f32 %v1846, %v1938
        %v1940 = vpop.f32.mrf.mxu0
        %1941 = vmatprep.mubr.f32.mxu0 0.0
        %1942 = vmatmul.mubr.f32.gmra.mxu0 %v1817
        %v1943 = vpop.f32.mrf.mxu0
        %v1944 = vadd.f32 %v1846, %v1943
        %v1945 = vpop.f32.mrf.mxu0
        %1946 = vmatprep.mubr.f32.mxu0 0.0
        %1947 = vmatmul.mubr.f32.gmra.mxu0 %v1818
        %v1948 = vpop.f32.mrf.mxu0
        %v1949 = vadd.f32 %v1846, %v1948
        %v1950 = vpop.f32.mrf.mxu0
        %1951 = vmatprep.mubr.f32.mxu0 0.0
        %1952 = vmatmul.mubr.f32.gmra.mxu0 %v1819
        %v1953 = vpop.f32.mrf.mxu0
        %v1954 = vadd.f32 %v1846, %v1953
        %v1955 = vpop.f32.mrf.mxu0
        %1956 = vmatprep.mubr.f32.mxu0 0.0
        %1957 = vmatmul.mubr.f32.gmra.mxu0 %v1820
        %v1958 = vpop.f32.mrf.mxu0
        %v1959 = vadd.f32 %v1846, %v1958
        %v1960 = vpop.f32.mrf.mxu0
        %1961 = vmatprep.mubr.f32.mxu0 0.0
        %1962 = vmatmul.mubr.f32.gmra.mxu0 %v1821
        %v1963 = vpop.f32.mrf.mxu0
        %v1964 = vadd.f32 %v1846, %v1963
        %v1965 = vpop.f32.mrf.mxu0
        %1966 = vmatprep.mubr.f32.mxu0 0.0
        %1967 = vmatmul.mubr.f32.gmra.mxu0 %v1822
        %v1968 = vpop.f32.mrf.mxu0
        %v1969 = vadd.f32 %v1846, %v1968
        %v1970 = vpop.f32.mrf.mxu0
        %1971 = vmatprep.mubr.f32.mxu0 0.0
        %1972 = vmatmul.mubr.f32.gmra.mxu0 %v1823
        %v1973 = vpop.f32.mrf.mxu0
        %v1974 = vadd.f32 %v1846, %v1973
        %v1975 = vpop.f32.mrf.mxu0
        %1976 = vmatprep.mubr.f32.mxu0 0.0
        %1977 = vmatmul.mubr.f32.gmra.mxu0 %v1824
        %v1978 = vpop.f32.mrf.mxu0
        %v1979 = vadd.f32 %v1846, %v1978
        %v1980 = vpop.f32.mrf.mxu0
        %1981 = vmatprep.mubr.f32.mxu0 0.0
        %1982 = vmatmul.mubr.f32.gmra.mxu0 %v1825
        %v1983 = vpop.f32.mrf.mxu0
        %v1984 = vadd.f32 %v1846, %v1983
        %v1985 = vpop.f32.mrf.mxu0
        %1986 = vmatprep.mubr.f32.mxu0 0.0
        %1987 = vmatmul.mubr.f32.gmra.mxu0 %v1826
        %v1988 = vpop.f32.mrf.mxu0
        %v1989 = vadd.f32 %v1846, %v1988
        %v1990 = vpop.f32.mrf.mxu0
        %1991 = vdwg.mxu0
        %v1992 = vmul.f32 %v1914, 0.5
        %v1993 = vmul.f32 %v1919, 0.5
        %v1994 = vmul.f32 %v1924, 0.5
        %v1995 = vmul.f32 %v1929, 0.5
        %v1996 = vmul.f32 %v1934, 0.5
        %v1997 = vmul.f32 %v1939, 0.5
        %v1998 = vmul.f32 %v1944, 0.5
        %v1999 = vmul.f32 %v1949, 0.5
        %v2000 = vmul.f32 %v1954, 0.5
        %v2001 = vmul.f32 %v1959, 0.5
        %v2002 = vmul.f32 %v1964, 0.5
        %v2003 = vmul.f32 %v1969, 0.5
        %v2004 = vmul.f32 %v1974, 0.5
        %v2005 = vmul.f32 %v1979, 0.5
        %v2006 = vmul.f32 %v1984, 0.5
        %v2007 = vmul.f32 %v1989, 0.5
        %v2008 = vmul.f32 %v1914, 0.70710677
        %v2009 = vmul.f32 %v1919, 0.70710677
        %v2010 = vmul.f32 %v1924, 0.70710677
        %v2011 = vmul.f32 %v1929, 0.70710677
        %v2012 = vmul.f32 %v1934, 0.70710677
        %v2013 = vmul.f32 %v1939, 0.70710677
        %v2014 = vmul.f32 %v1944, 0.70710677
        %v2015 = vmul.f32 %v1949, 0.70710677
        %v2016 = vmul.f32 %v1954, 0.70710677
        %v2017 = vmul.f32 %v1959, 0.70710677
        %v2018 = vmul.f32 %v1964, 0.70710677
        %v2019 = vmul.f32 %v1969, 0.70710677
        %v2020 = vmul.f32 %v1974, 0.70710677
        %v2021 = vmul.f32 %v1979, 0.70710677
        %v2022 = vmul.f32 %v1984, 0.70710677
        %v2023 = vmul.f32 %v1989, 0.70710677
        %vm2024 = vcmp.ge.f32.partialorder %v2008, 0.0
        %vm2025 = vcmp.ge.f32.partialorder %v2009, 0.0
        %vm2026 = vcmp.ge.f32.partialorder %v2010, 0.0
        %vm2027 = vcmp.ge.f32.partialorder %v2011, 0.0
        %vm2028 = vcmp.ge.f32.partialorder %v2012, 0.0
        %vm2029 = vcmp.ge.f32.partialorder %v2013, 0.0
        %vm2030 = vcmp.ge.f32.partialorder %v2014, 0.0
        %vm2031 = vcmp.ge.f32.partialorder %v2015, 0.0
        %vm2032 = vcmp.ge.f32.partialorder %v2016, 0.0
        %vm2033 = vcmp.ge.f32.partialorder %v2017, 0.0
        %vm2034 = vcmp.ge.f32.partialorder %v2018, 0.0
        %vm2035 = vcmp.ge.f32.partialorder %v2019, 0.0
        %vm2036 = vcmp.ge.f32.partialorder %v2020, 0.0
        %vm2037 = vcmp.ge.f32.partialorder %v2021, 0.0
        %vm2038 = vcmp.ge.f32.partialorder %v2022, 0.0
        %vm2039 = vcmp.ge.f32.partialorder %v2023, 0.0
        %v2040 = vsel %vm2024, 1.0, -1.0
        %v2041 = vsel %vm2025, 1.0, -1.0
        %v2042 = vsel %vm2026, 1.0, -1.0
        %v2043 = vsel %vm2027, 1.0, -1.0
        %v2044 = vsel %vm2028, 1.0, -1.0
        %v2045 = vsel %vm2029, 1.0, -1.0
        %v2046 = vsel %vm2030, 1.0, -1.0
        %v2047 = vsel %vm2031, 1.0, -1.0
        %v2048 = vsel %vm2032, 1.0, -1.0
        %v2049 = vsel %vm2033, 1.0, -1.0
        %v2050 = vsel %vm2034, 1.0, -1.0
        %v2051 = vsel %vm2035, 1.0, -1.0
        %v2052 = vsel %vm2036, 1.0, -1.0
        %v2053 = vsel %vm2037, 1.0, -1.0
        %v2054 = vsel %vm2038, 1.0, -1.0
        %v2055 = vsel %vm2039, 1.0, -1.0
        %v2056 = vand.u32 2147483647, %v2008
        %v2057 = vand.u32 2147483647, %v2009
        %v2058 = vand.u32 2147483647, %v2010
        %v2059 = vand.u32 2147483647, %v2011
        %v2060 = vand.u32 2147483647, %v2012
        %v2061 = vand.u32 2147483647, %v2013
        %v2062 = vand.u32 2147483647, %v2014
        %v2063 = vand.u32 2147483647, %v2015
        %v2064 = vand.u32 2147483647, %v2016
        %v2065 = vand.u32 2147483647, %v2017
        %v2066 = vand.u32 2147483647, %v2018
        %v2067 = vand.u32 2147483647, %v2019
        %v2068 = vand.u32 2147483647, %v2020
        %v2069 = vand.u32 2147483647, %v2021
        %v2070 = vand.u32 2147483647, %v2022
        %v2071 = vand.u32 2147483647, %v2023
        %v2072 = vmul.f32 %v2056, 0.3275911
        %v2073 = vmul.f32 %v2057, 0.3275911
        %v2074 = vmul.f32 %v2058, 0.3275911
        %v2075 = vmul.f32 %v2059, 0.3275911
        %v2076 = vmul.f32 %v2060, 0.3275911
        %v2077 = vmul.f32 %v2061, 0.3275911
        %v2078 = vmul.f32 %v2062, 0.3275911
        %v2079 = vmul.f32 %v2063, 0.3275911
        %v2080 = vmul.f32 %v2064, 0.3275911
        %v2081 = vmul.f32 %v2065, 0.3275911
        %v2082 = vmul.f32 %v2066, 0.3275911
        %v2083 = vmul.f32 %v2067, 0.3275911
        %v2084 = vmul.f32 %v2068, 0.3275911
        %v2085 = vmul.f32 %v2069, 0.3275911
        %v2086 = vmul.f32 %v2070, 0.3275911
        %v2087 = vmul.f32 %v2071, 0.3275911
        %v2088 = vadd.f32 %v2072, 1.0
        %v2089 = vadd.f32 %v2073, 1.0
        %v2090 = vadd.f32 %v2074, 1.0
        %v2091 = vadd.f32 %v2075, 1.0
        %v2092 = vadd.f32 %v2076, 1.0
        %v2093 = vadd.f32 %v2077, 1.0
        %v2094 = vadd.f32 %v2078, 1.0
        %v2095 = vadd.f32 %v2079, 1.0
        %v2096 = vadd.f32 %v2080, 1.0
        %v2097 = vadd.f32 %v2081, 1.0
        %v2098 = vadd.f32 %v2082, 1.0
        %v2099 = vadd.f32 %v2083, 1.0
        %v2100 = vadd.f32 %v2084, 1.0
        %v2101 = vadd.f32 %v2085, 1.0
        %v2102 = vadd.f32 %v2086, 1.0
        %v2103 = vadd.f32 %v2087, 1.0
        %v2104 = vrcp.pop %v2088
        %v2105 = vmul.f32 1.0, %v2104
        %v2106 = vrcp.pop %v2089
        %v2107 = vmul.f32 1.0, %v2106
        %v2108 = vrcp.pop %v2090
        %v2109 = vmul.f32 1.0, %v2108
        %v2110 = vrcp.pop %v2091
        %v2111 = vmul.f32 1.0, %v2110
        %v2112 = vrcp.pop %v2092
        %v2113 = vmul.f32 1.0, %v2112
        %v2114 = vrcp.pop %v2093
        %v2115 = vmul.f32 1.0, %v2114
        %v2116 = vrcp.pop %v2094
        %v2117 = vmul.f32 1.0, %v2116
        %v2118 = vrcp.pop %v2095
        %v2119 = vmul.f32 1.0, %v2118
        %v2120 = vrcp.pop %v2096
        %v2121 = vmul.f32 1.0, %v2120
        %v2122 = vrcp.pop %v2097
        %v2123 = vmul.f32 1.0, %v2122
        %v2124 = vrcp.pop %v2098
        %v2125 = vmul.f32 1.0, %v2124
        %v2126 = vrcp.pop %v2099
        %v2127 = vmul.f32 1.0, %v2126
        %v2128 = vrcp.pop %v2100
        %v2129 = vmul.f32 1.0, %v2128
        %v2130 = vrcp.pop %v2101
        %v2131 = vmul.f32 1.0, %v2130
        %v2132 = vrcp.pop %v2102
        %v2133 = vmul.f32 1.0, %v2132
        %v2134 = vrcp.pop %v2103
        %v2135 = vmul.f32 1.0, %v2134
        %v2136 = vmul.f32 %v2105, 1.0614054
        %v2137 = vmul.f32 %v2107, 1.0614054
        %v2138 = vmul.f32 %v2109, 1.0614054
        %v2139 = vmul.f32 %v2111, 1.0614054
        %v2140 = vmul.f32 %v2113, 1.0614054
        %v2141 = vmul.f32 %v2115, 1.0614054
        %v2142 = vmul.f32 %v2117, 1.0614054
        %v2143 = vmul.f32 %v2119, 1.0614054
        %v2144 = vmul.f32 %v2121, 1.0614054
        %v2145 = vmul.f32 %v2123, 1.0614054
        %v2146 = vmul.f32 %v2125, 1.0614054
        %v2147 = vmul.f32 %v2127, 1.0614054
        %v2148 = vmul.f32 %v2129, 1.0614054
        %v2149 = vmul.f32 %v2131, 1.0614054
        %v2150 = vmul.f32 %v2133, 1.0614054
        %v2151 = vmul.f32 %v2135, 1.0614054
        %v2152 = vadd.f32 %v2136, -1.4531521
        %v2153 = vadd.f32 %v2137, -1.4531521
        %v2154 = vadd.f32 %v2138, -1.4531521
        %v2155 = vadd.f32 %v2139, -1.4531521
        %v2156 = vadd.f32 %v2140, -1.4531521
        %v2157 = vadd.f32 %v2141, -1.4531521
        %v2158 = vadd.f32 %v2142, -1.4531521
        %v2159 = vadd.f32 %v2143, -1.4531521
        %v2160 = vadd.f32 %v2144, -1.4531521
        %v2161 = vadd.f32 %v2145, -1.4531521
        %v2162 = vadd.f32 %v2146, -1.4531521
        %v2163 = vadd.f32 %v2147, -1.4531521
        %v2164 = vadd.f32 %v2148, -1.4531521
        %v2165 = vadd.f32 %v2149, -1.4531521
        %v2166 = vadd.f32 %v2150, -1.4531521
        %v2167 = vadd.f32 %v2151, -1.4531521
        %v2168 = vmul.f32 %v2152, %v2105
        %v2169 = vmul.f32 %v2153, %v2107
        %v2170 = vmul.f32 %v2154, %v2109
        %v2171 = vmul.f32 %v2155, %v2111
        %v2172 = vmul.f32 %v2156, %v2113
        %v2173 = vmul.f32 %v2157, %v2115
        %v2174 = vmul.f32 %v2158, %v2117
        %v2175 = vmul.f32 %v2159, %v2119
        %v2176 = vmul.f32 %v2160, %v2121
        %v2177 = vmul.f32 %v2161, %v2123
        %v2178 = vmul.f32 %v2162, %v2125
        %v2179 = vmul.f32 %v2163, %v2127
        %v2180 = vmul.f32 %v2164, %v2129
        %v2181 = vmul.f32 %v2165, %v2131
        %v2182 = vmul.f32 %v2166, %v2133
        %v2183 = vmul.f32 %v2167, %v2135
        %v2184 = vadd.f32 %v2168, 1.4214138
        %v2185 = vadd.f32 %v2169, 1.4214138
        %v2186 = vadd.f32 %v2170, 1.4214138
        %v2187 = vadd.f32 %v2171, 1.4214138
        %v2188 = vadd.f32 %v2172, 1.4214138
        %v2189 = vadd.f32 %v2173, 1.4214138
        %v2190 = vadd.f32 %v2174, 1.4214138
        %v2191 = vadd.f32 %v2175, 1.4214138
        %v2192 = vadd.f32 %v2176, 1.4214138
        %v2193 = vadd.f32 %v2177, 1.4214138
        %v2194 = vadd.f32 %v2178, 1.4214138
        %v2195 = vadd.f32 %v2179, 1.4214138
        %v2196 = vadd.f32 %v2180, 1.4214138
        %v2197 = vadd.f32 %v2181, 1.4214138
        %v2198 = vadd.f32 %v2182, 1.4214138
        %v2199 = vadd.f32 %v2183, 1.4214138
        %v2200 = vmul.f32 %v2184, %v2105
        %v2201 = vmul.f32 %v2185, %v2107
        %v2202 = vmul.f32 %v2186, %v2109
        %v2203 = vmul.f32 %v2187, %v2111
        %v2204 = vmul.f32 %v2188, %v2113
        %v2205 = vmul.f32 %v2189, %v2115
        %v2206 = vmul.f32 %v2190, %v2117
        %v2207 = vmul.f32 %v2191, %v2119
        %v2208 = vmul.f32 %v2192, %v2121
        %v2209 = vmul.f32 %v2193, %v2123
        %v2210 = vmul.f32 %v2194, %v2125
        %v2211 = vmul.f32 %v2195, %v2127
        %v2212 = vmul.f32 %v2196, %v2129
        %v2213 = vmul.f32 %v2197, %v2131
        %v2214 = vmul.f32 %v2198, %v2133
        %v2215 = vmul.f32 %v2199, %v2135
        %v2216 = vadd.f32 %v2200, -0.28449672
        %v2217 = vadd.f32 %v2201, -0.28449672
        %v2218 = vadd.f32 %v2202, -0.28449672
        %v2219 = vadd.f32 %v2203, -0.28449672
        %v2220 = vadd.f32 %v2204, -0.28449672
        %v2221 = vadd.f32 %v2205, -0.28449672
        %v2222 = vadd.f32 %v2206, -0.28449672
        %v2223 = vadd.f32 %v2207, -0.28449672
        %v2224 = vadd.f32 %v2208, -0.28449672
        %v2225 = vadd.f32 %v2209, -0.28449672
        %v2226 = vadd.f32 %v2210, -0.28449672
        %v2227 = vadd.f32 %v2211, -0.28449672
        %v2228 = vadd.f32 %v2212, -0.28449672
        %v2229 = vadd.f32 %v2213, -0.28449672
        %v2230 = vadd.f32 %v2214, -0.28449672
        %v2231 = vadd.f32 %v2215, -0.28449672
        %v2232 = vmul.f32 %v2216, %v2105
        %v2233 = vmul.f32 %v2217, %v2107
        %v2234 = vmul.f32 %v2218, %v2109
        %v2235 = vmul.f32 %v2219, %v2111
        %v2236 = vmul.f32 %v2220, %v2113
        %v2237 = vmul.f32 %v2221, %v2115
        %v2238 = vmul.f32 %v2222, %v2117
        %v2239 = vmul.f32 %v2223, %v2119
        %v2240 = vmul.f32 %v2224, %v2121
        %v2241 = vmul.f32 %v2225, %v2123
        %v2242 = vmul.f32 %v2226, %v2125
        %v2243 = vmul.f32 %v2227, %v2127
        %v2244 = vmul.f32 %v2228, %v2129
        %v2245 = vmul.f32 %v2229, %v2131
        %v2246 = vmul.f32 %v2230, %v2133
        %v2247 = vmul.f32 %v2231, %v2135
        %v2248 = vadd.f32 %v2232, 0.2548296
        %v2249 = vadd.f32 %v2233, 0.2548296
        %v2250 = vadd.f32 %v2234, 0.2548296
        %v2251 = vadd.f32 %v2235, 0.2548296
        %v2252 = vadd.f32 %v2236, 0.2548296
        %v2253 = vadd.f32 %v2237, 0.2548296
        %v2254 = vadd.f32 %v2238, 0.2548296
        %v2255 = vadd.f32 %v2239, 0.2548296
        %v2256 = vadd.f32 %v2240, 0.2548296
        %v2257 = vadd.f32 %v2241, 0.2548296
        %v2258 = vadd.f32 %v2242, 0.2548296
        %v2259 = vadd.f32 %v2243, 0.2548296
        %v2260 = vadd.f32 %v2244, 0.2548296
        %v2261 = vadd.f32 %v2245, 0.2548296
        %v2262 = vadd.f32 %v2246, 0.2548296
        %v2263 = vadd.f32 %v2247, 0.2548296
        %v2264 = vmul.f32 %v2248, %v2105
        %v2265 = vmul.f32 %v2249, %v2107
        %v2266 = vmul.f32 %v2250, %v2109
        %v2267 = vmul.f32 %v2251, %v2111
        %v2268 = vmul.f32 %v2252, %v2113
        %v2269 = vmul.f32 %v2253, %v2115
        %v2270 = vmul.f32 %v2254, %v2117
        %v2271 = vmul.f32 %v2255, %v2119
        %v2272 = vmul.f32 %v2256, %v2121
        %v2273 = vmul.f32 %v2257, %v2123
        %v2274 = vmul.f32 %v2258, %v2125
        %v2275 = vmul.f32 %v2259, %v2127
        %v2276 = vmul.f32 %v2260, %v2129
        %v2277 = vmul.f32 %v2261, %v2131
        %v2278 = vmul.f32 %v2262, %v2133
        %v2279 = vmul.f32 %v2263, %v2135
        %v2280 = vsub.f32 0.0, %v2056
        %v2281 = vsub.f32 0.0, %v2057
        %v2282 = vsub.f32 0.0, %v2058
        %v2283 = vsub.f32 0.0, %v2059
        %v2284 = vsub.f32 0.0, %v2060
        %v2285 = vsub.f32 0.0, %v2061
        %v2286 = vsub.f32 0.0, %v2062
        %v2287 = vsub.f32 0.0, %v2063
        %v2288 = vsub.f32 0.0, %v2064
        %v2289 = vsub.f32 0.0, %v2065
        %v2290 = vsub.f32 0.0, %v2066
        %v2291 = vsub.f32 0.0, %v2067
        %v2292 = vsub.f32 0.0, %v2068
        %v2293 = vsub.f32 0.0, %v2069
        %v2294 = vsub.f32 0.0, %v2070
        %v2295 = vsub.f32 0.0, %v2071
        %v2296 = vmul.f32 %v2280, %v2056
        %v2297 = vmul.f32 %v2281, %v2057
        %v2298 = vmul.f32 %v2282, %v2058
        %v2299 = vmul.f32 %v2283, %v2059
        %v2300 = vmul.f32 %v2284, %v2060
        %v2301 = vmul.f32 %v2285, %v2061
        %v2302 = vmul.f32 %v2286, %v2062
        %v2303 = vmul.f32 %v2287, %v2063
        %v2304 = vmul.f32 %v2288, %v2064
        %v2305 = vmul.f32 %v2289, %v2065
        %v2306 = vmul.f32 %v2290, %v2066
        %v2307 = vmul.f32 %v2291, %v2067
        %v2308 = vmul.f32 %v2292, %v2068
        %v2309 = vmul.f32 %v2293, %v2069
        %v2310 = vmul.f32 %v2294, %v2070
        %v2311 = vmul.f32 %v2295, %v2071
        %v2312 = vmul.f32 %v2296, 1.442695
        %v2313 = vpow.pop %v2312
        %v2314 = vmul.f32 %v2297, 1.442695
        %v2315 = vpow.pop %v2314
        %v2316 = vmul.f32 %v2298, 1.442695
        %v2317 = vpow.pop %v2316
        %v2318 = vmul.f32 %v2299, 1.442695
        %v2319 = vpow.pop %v2318
        %v2320 = vmul.f32 %v2300, 1.442695
        %v2321 = vpow.pop %v2320
        %v2322 = vmul.f32 %v2301, 1.442695
        %v2323 = vpow.pop %v2322
        %v2324 = vmul.f32 %v2302, 1.442695
        %v2325 = vpow.pop %v2324
        %v2326 = vmul.f32 %v2303, 1.442695
        %v2327 = vpow.pop %v2326
        %v2328 = vmul.f32 %v2304, 1.442695
        %v2329 = vpow.pop %v2328
        %v2330 = vmul.f32 %v2305, 1.442695
        %v2331 = vpow.pop %v2330
        %v2332 = vmul.f32 %v2306, 1.442695
        %v2333 = vpow.pop %v2332
        %v2334 = vmul.f32 %v2307, 1.442695
        %v2335 = vpow.pop %v2334
        %v2336 = vmul.f32 %v2308, 1.442695
        %v2337 = vpow.pop %v2336
        %v2338 = vmul.f32 %v2309, 1.442695
        %v2339 = vpow.pop %v2338
        %v2340 = vmul.f32 %v2310, 1.442695
        %v2341 = vpow.pop %v2340
        %v2342 = vmul.f32 %v2311, 1.442695
        %v2343 = vpow.pop %v2342
        %v2344 = vmul.f32 %v2264, %v2313
        %v2345 = vmul.f32 %v2265, %v2315
        %v2346 = vmul.f32 %v2266, %v2317
        %v2347 = vmul.f32 %v2267, %v2319
        %v2348 = vmul.f32 %v2268, %v2321
        %v2349 = vmul.f32 %v2269, %v2323
        %v2350 = vmul.f32 %v2270, %v2325
        %v2351 = vmul.f32 %v2271, %v2327
        %v2352 = vmul.f32 %v2272, %v2329
        %v2353 = vmul.f32 %v2273, %v2331
        %v2354 = vmul.f32 %v2274, %v2333
        %v2355 = vmul.f32 %v2275, %v2335
        %v2356 = vmul.f32 %v2276, %v2337
        %v2357 = vmul.f32 %v2277, %v2339
        %v2358 = vmul.f32 %v2278, %v2341
        %v2359 = vmul.f32 %v2279, %v2343
        %v2360 = vsub.f32 1.0, %v2344
        %v2361 = vsub.f32 1.0, %v2345
        %v2362 = vsub.f32 1.0, %v2346
        %v2363 = vsub.f32 1.0, %v2347
        %v2364 = vsub.f32 1.0, %v2348
        %v2365 = vsub.f32 1.0, %v2349
        %v2366 = vsub.f32 1.0, %v2350
        %v2367 = vsub.f32 1.0, %v2351
        %v2368 = vsub.f32 1.0, %v2352
        %v2369 = vsub.f32 1.0, %v2353
        %v2370 = vsub.f32 1.0, %v2354
        %v2371 = vsub.f32 1.0, %v2355
        %v2372 = vsub.f32 1.0, %v2356
        %v2373 = vsub.f32 1.0, %v2357
        %v2374 = vsub.f32 1.0, %v2358
        %v2375 = vsub.f32 1.0, %v2359
        %v2376 = vmul.f32 %v2040, %v2360
        %v2377 = vmul.f32 %v2041, %v2361
        %v2378 = vmul.f32 %v2042, %v2362
        %v2379 = vmul.f32 %v2043, %v2363
        %v2380 = vmul.f32 %v2044, %v2364
        %v2381 = vmul.f32 %v2045, %v2365
        %v2382 = vmul.f32 %v2046, %v2366
        %v2383 = vmul.f32 %v2047, %v2367
        %v2384 = vmul.f32 %v2048, %v2368
        %v2385 = vmul.f32 %v2049, %v2369
        %v2386 = vmul.f32 %v2050, %v2370
        %v2387 = vmul.f32 %v2051, %v2371
        %v2388 = vmul.f32 %v2052, %v2372
        %v2389 = vmul.f32 %v2053, %v2373
        %v2390 = vmul.f32 %v2054, %v2374
        %v2391 = vmul.f32 %v2055, %v2375
        %v2392 = vadd.f32 %v2376, 1.0
        %v2393 = vadd.f32 %v2377, 1.0
        %v2394 = vadd.f32 %v2378, 1.0
        %v2395 = vadd.f32 %v2379, 1.0
        %v2396 = vadd.f32 %v2380, 1.0
        %v2397 = vadd.f32 %v2381, 1.0
        %v2398 = vadd.f32 %v2382, 1.0
        %v2399 = vadd.f32 %v2383, 1.0
        %v2400 = vadd.f32 %v2384, 1.0
        %v2401 = vadd.f32 %v2385, 1.0
        %v2402 = vadd.f32 %v2386, 1.0
        %v2403 = vadd.f32 %v2387, 1.0
        %v2404 = vadd.f32 %v2388, 1.0
        %v2405 = vadd.f32 %v2389, 1.0
        %v2406 = vadd.f32 %v2390, 1.0
        %v2407 = vadd.f32 %v2391, 1.0
        %v2408 = vmul.f32 %v1992, %v2392
        %v2409 = vmul.f32 %v1993, %v2393
        %v2410 = vmul.f32 %v1994, %v2394
        %v2411 = vmul.f32 %v1995, %v2395
        %v2412 = vmul.f32 %v1996, %v2396
        %v2413 = vmul.f32 %v1997, %v2397
        %v2414 = vmul.f32 %v1998, %v2398
        %v2415 = vmul.f32 %v1999, %v2399
        %v2416 = vmul.f32 %v2000, %v2400
        %v2417 = vmul.f32 %v2001, %v2401
        %v2418 = vmul.f32 %v2002, %v2402
        %v2419 = vmul.f32 %v2003, %v2403
        %v2420 = vmul.f32 %v2004, %v2404
        %v2421 = vmul.f32 %v2005, %v2405
        %v2422 = vmul.f32 %v2006, %v2406
        %v2423 = vmul.f32 %v2007, %v2407
        %s2424 = scalar_lea.vmem [#allocation7], 128
        %v2425 = vld [vmem:[%s2424] sm:$0xff]
        %v2426 = vld [vmem:[%s2424 + $0x8] sm:$0xff]
        %v2427 = vld [vmem:[%s2424 + $0x10] sm:$0xff]
        %v2428 = vld [vmem:[%s2424 + $0x18] sm:$0xff]
        %v2429 = vld [vmem:[%s2424 + $0x20] sm:$0xff]
        %v2430 = vld [vmem:[%s2424 + $0x28] sm:$0xff]
        %v2431 = vld [vmem:[%s2424 + $0x30] sm:$0xff]
        %v2432 = vld [vmem:[%s2424 + $0x38] sm:$0xff]
        %v2433 = vld [vmem:[%s2424 + $0x40] sm:$0xff]
        %v2434 = vld [vmem:[%s2424 + $0x48] sm:$0xff]
        %v2435 = vld [vmem:[%s2424 + $0x50] sm:$0xff]
        %v2436 = vld [vmem:[%s2424 + $0x58] sm:$0xff]
        %v2437 = vld [vmem:[%s2424 + $0x60] sm:$0xff]
        %v2438 = vld [vmem:[%s2424 + $0x68] sm:$0xff]
        %v2439 = vld [vmem:[%s2424 + $0x70] sm:$0xff]
        %v2440 = vld [vmem:[%s2424 + $0x78] sm:$0xff]
        %v2441 = vlaneseq
        %v2442 = vshrl.u32 %v2441, 7
        %v2443 = vsub.s32 5, %v2442
        %v2444 = vrot.slane %v275, %v2443
        %2445 = vmatprep.subr.mxu0 0.0
        %2446 = vmatpush1.msra.mxu0 %v2440
        %2447 = vmatprep.subr.mxu0 0.0
        %2448 = vmatpush1.msra.mxu0 %v2439
        %2449 = vmatprep.subr.mxu0 0.0
        %2450 = vmatpush1.msra.mxu0 %v2438
        %2451 = vmatprep.subr.mxu0 0.0
        %2452 = vmatpush1.msra.mxu0 %v2437
        %2453 = vmatprep.subr.mxu0 0.0
        %2454 = vmatpush1.msra.mxu0 %v2436
        %2455 = vmatprep.subr.mxu0 0.0
        %2456 = vmatpush1.msra.mxu0 %v2435
        %2457 = vmatprep.subr.mxu0 0.0
        %2458 = vmatpush1.msra.mxu0 %v2434
        %2459 = vmatprep.subr.mxu0 0.0
        %2460 = vmatpush1.msra.mxu0 %v2433
        %2461 = vmatprep.subr.mxu0 0.0
        %2462 = vmatpush1.msra.mxu0 %v2432
        %2463 = vmatprep.subr.mxu0 0.0
        %2464 = vmatpush1.msra.mxu0 %v2431
        %2465 = vmatprep.subr.mxu0 0.0
        %2466 = vmatpush1.msra.mxu0 %v2430
        %2467 = vmatprep.subr.mxu0 0.0
        %2468 = vmatpush1.msra.mxu0 %v2429
        %2469 = vmatprep.subr.mxu0 0.0
        %2470 = vmatpush1.msra.mxu0 %v2428
        %2471 = vmatprep.subr.mxu0 0.0
        %2472 = vmatpush1.msra.mxu0 %v2427
        %2473 = vmatprep.subr.mxu0 0.0
        %2474 = vmatpush1.msra.mxu0 %v2426
        %2475 = vmatprep.subr.mxu0 0.0
        %2476 = vmatpush1.msra.mxu0 %v2425
        %2477 = vmatprep.subr.mxu0 0.0
        %2478 = vmatpush2.msra.mxu0 0.0
        %2479 = vmatprep.subr.mxu0 0.0
        %2480 = vmatpush2.msra.mxu0 0.0
        %2481 = vmatprep.subr.mxu0 0.0
        %2482 = vmatpush2.msra.mxu0 0.0
        %2483 = vmatprep.subr.mxu0 0.0
        %2484 = vmatpush2.msra.mxu0 0.0
        %2485 = vmatprep.subr.mxu0 0.0
        %2486 = vmatpush2.msra.mxu0 0.0
        %2487 = vmatprep.subr.mxu0 0.0
        %2488 = vmatpush2.msra.mxu0 0.0
        %2489 = vmatprep.subr.mxu0 0.0
        %2490 = vmatpush2.msra.mxu0 0.0
        %2491 = vmatprep.subr.mxu0 0.0
        %2492 = vmatpush2.msra.mxu0 0.0
        %2493 = vmatprep.subr.mxu0 0.0
        %2494 = vmatpush2.msra.mxu0 0.0
        %2495 = vmatprep.subr.mxu0 0.0
        %2496 = vmatpush2.msra.mxu0 0.0
        %2497 = vmatprep.subr.mxu0 0.0
        %2498 = vmatpush2.msra.mxu0 0.0
        %2499 = vmatprep.subr.mxu0 0.0
        %2500 = vmatpush2.msra.mxu0 0.0
        %2501 = vmatprep.subr.mxu0 0.0
        %2502 = vmatpush2.msra.mxu0 0.0
        %2503 = vmatprep.subr.mxu0 0.0
        %2504 = vmatpush2.msra.mxu0 0.0
        %2505 = vmatprep.subr.mxu0 0.0
        %2506 = vmatpush2.msra.mxu0 0.0
        %2507 = vmatprep.subr.mxu0 0.0
        %2508 = vmatpush2.msra.mxu0 0.0
        %2509 = vmatprep.mubr.f32.mxu0 0.0
        %2510 = vmatmul.mubr.f32.gmra.mxu0 %v2408
        %v2511 = vpop.f32.mrf.mxu0
        %v2512 = vadd.f32 %v2444, %v2511
        %v2513 = vpop.f32.mrf.mxu0
        %2514 = vmatprep.mubr.f32.mxu0 0.0
        %2515 = vmatmul.mubr.f32.gmra.mxu0 %v2409
        %v2516 = vpop.f32.mrf.mxu0
        %v2517 = vadd.f32 %v2444, %v2516
        %v2518 = vpop.f32.mrf.mxu0
        %2519 = vmatprep.mubr.f32.mxu0 0.0
        %2520 = vmatmul.mubr.f32.gmra.mxu0 %v2410
        %v2521 = vpop.f32.mrf.mxu0
        %v2522 = vadd.f32 %v2444, %v2521
        %v2523 = vpop.f32.mrf.mxu0
        %2524 = vmatprep.mubr.f32.mxu0 0.0
        %2525 = vmatmul.mubr.f32.gmra.mxu0 %v2411
        %v2526 = vpop.f32.mrf.mxu0
        %v2527 = vadd.f32 %v2444, %v2526
        %v2528 = vpop.f32.mrf.mxu0
        %2529 = vmatprep.mubr.f32.mxu0 0.0
        %2530 = vmatmul.mubr.f32.gmra.mxu0 %v2412
        %v2531 = vpop.f32.mrf.mxu0
        %v2532 = vadd.f32 %v2444, %v2531
        %v2533 = vpop.f32.mrf.mxu0
        %2534 = vmatprep.mubr.f32.mxu0 0.0
        %2535 = vmatmul.mubr.f32.gmra.mxu0 %v2413
        %v2536 = vpop.f32.mrf.mxu0
        %v2537 = vadd.f32 %v2444, %v2536
        %v2538 = vpop.f32.mrf.mxu0
        %2539 = vmatprep.mubr.f32.mxu0 0.0
        %2540 = vmatmul.mubr.f32.gmra.mxu0 %v2414
        %v2541 = vpop.f32.mrf.mxu0
        %v2542 = vadd.f32 %v2444, %v2541
        %v2543 = vpop.f32.mrf.mxu0
        %2544 = vmatprep.mubr.f32.mxu0 0.0
        %2545 = vmatmul.mubr.f32.gmra.mxu0 %v2415
        %v2546 = vpop.f32.mrf.mxu0
        %v2547 = vadd.f32 %v2444, %v2546
        %v2548 = vpop.f32.mrf.mxu0
        %2549 = vmatprep.mubr.f32.mxu0 0.0
        %2550 = vmatmul.mubr.f32.gmra.mxu0 %v2416
        %v2551 = vpop.f32.mrf.mxu0
        %v2552 = vadd.f32 %v2444, %v2551
        %v2553 = vpop.f32.mrf.mxu0
        %2554 = vmatprep.mubr.f32.mxu0 0.0
        %2555 = vmatmul.mubr.f32.gmra.mxu0 %v2417
        %v2556 = vpop.f32.mrf.mxu0
        %v2557 = vadd.f32 %v2444, %v2556
        %v2558 = vpop.f32.mrf.mxu0
        %2559 = vmatprep.mubr.f32.mxu0 0.0
        %2560 = vmatmul.mubr.f32.gmra.mxu0 %v2418
        %v2561 = vpop.f32.mrf.mxu0
        %v2562 = vadd.f32 %v2444, %v2561
        %v2563 = vpop.f32.mrf.mxu0
        %2564 = vmatprep.mubr.f32.mxu0 0.0
        %2565 = vmatmul.mubr.f32.gmra.mxu0 %v2419
        %v2566 = vpop.f32.mrf.mxu0
        %v2567 = vadd.f32 %v2444, %v2566
        %v2568 = vpop.f32.mrf.mxu0
        %2569 = vmatprep.mubr.f32.mxu0 0.0
        %2570 = vmatmul.mubr.f32.gmra.mxu0 %v2420
        %v2571 = vpop.f32.mrf.mxu0
        %v2572 = vadd.f32 %v2444, %v2571
        %v2573 = vpop.f32.mrf.mxu0
        %2574 = vmatprep.mubr.f32.mxu0 0.0
        %2575 = vmatmul.mubr.f32.gmra.mxu0 %v2421
        %v2576 = vpop.f32.mrf.mxu0
        %v2577 = vadd.f32 %v2444, %v2576
        %v2578 = vpop.f32.mrf.mxu0
        %2579 = vmatprep.mubr.f32.mxu0 0.0
        %2580 = vmatmul.mubr.f32.gmra.mxu0 %v2422
        %v2581 = vpop.f32.mrf.mxu0
        %v2582 = vadd.f32 %v2444, %v2581
        %v2583 = vpop.f32.mrf.mxu0
        %2584 = vmatprep.mubr.f32.mxu0 0.0
        %2585 = vmatmul.mubr.f32.gmra.mxu0 %v2423
        %v2586 = vpop.f32.mrf.mxu0
        %v2587 = vadd.f32 %v2444, %v2586
        %v2588 = vpop.f32.mrf.mxu0
        %2589 = vdwg.mxu0
        %v2590 = vadd.f32 %v1595, %v2512
        %v2591 = vadd.f32 %v1596, %v2517
        %v2592 = vadd.f32 %v1597, %v2522
        %v2593 = vadd.f32 %v1598, %v2527
        %v2594 = vadd.f32 %v1599, %v2532
        %v2595 = vadd.f32 %v1600, %v2537
        %v2596 = vadd.f32 %v1601, %v2542
        %v2597 = vadd.f32 %v1602, %v2547
        %v2598 = vadd.f32 %v1603, %v2552
        %v2599 = vadd.f32 %v1604, %v2557
        %v2600 = vadd.f32 %v1605, %v2562
        %v2601 = vadd.f32 %v1606, %v2567
        %v2602 = vadd.f32 %v1607, %v2572
        %v2603 = vadd.f32 %v1608, %v2577
        %v2604 = vadd.f32 %v1609, %v2582
        %v2605 = vadd.f32 %v1610, %v2587
        %2606 = vst [vmem:[%s272] sm:$0xff] %v2590
        %2607 = vst [vmem:[%s272 + $0x8] sm:$0xff] %v2591
        %2608 = vst [vmem:[%s272 + $0x10] sm:$0xff] %v2592
        %2609 = vst [vmem:[%s272 + $0x18] sm:$0xff] %v2593
        %2610 = vst [vmem:[%s272 + $0x20] sm:$0xff] %v2594
        %2611 = vst [vmem:[%s272 + $0x28] sm:$0xff] %v2595
        %2612 = vst [vmem:[%s272 + $0x30] sm:$0xff] %v2596
        %2613 = vst [vmem:[%s272 + $0x38] sm:$0xff] %v2597
        %2614 = vst [vmem:[%s272 + $0x40] sm:$0xff] %v2598
        %2615 = vst [vmem:[%s272 + $0x48] sm:$0xff] %v2599
        %2616 = vst [vmem:[%s272 + $0x50] sm:$0xff] %v2600
        %2617 = vst [vmem:[%s272 + $0x58] sm:$0xff] %v2601
        %2618 = vst [vmem:[%s272 + $0x60] sm:$0xff] %v2602
        %2619 = vst [vmem:[%s272 + $0x68] sm:$0xff] %v2603
        %2620 = vst [vmem:[%s272 + $0x70] sm:$0xff] %v2604
        %2621 = vst [vmem:[%s272 + $0x78] sm:$0xff] %v2605
        %s2622 = sand.u32 %s141, 1
        %s2623 = scalar_lea.sflag [#allocation4], %s2622
        %s2624 = sand.u32 %s141, 1
        %s2625 = smul.addr %s2624, 128
        %s2626 = scalar_lea.vmem [#allocation8], %s2625
        // Predicated region
        $region53: #{tpu_custom_call.1} parent=39 // pred_check
          %p2627 = pneg %p151
        $region54: #{tpu_custom_call.1} parent=39 // pred_check_branch
          %2629 = sbr.rel (%p2627) target = $region56
        $region55: #{tpu_custom_call.1} parent=39 // pred_region
          %s2630 = smul.u32 8, %s23
          %s2632 = ssub.s32 2048, 2048
          %2633 = vsyncadd %s2623, %s2632
          %s2634 = smul.addr %s2630, 2
          %s2635 = smul.addr %s2634, 128
          %s2636 = scalar_lea.hbm %s5, %s2635
          %s2637 = sshll.u32 %s2626, 4
          %s2638 = int_to_ptr.vmem [resolvable:$true] %s2637
          %2643 = dma.vmem_to_hbm [thread:$0]  %s2638, 2048, %s2636, %s2623, 128, 128, 8
        $region56: #{tpu_custom_call.1} parent=39 // pred_fallthru
          _
      $region40: #{tpu_custom_call.1} parent=5 // pred_fallthru
        _
      %p2644 = scmp.le.s32.totalorder 2, %s18
      // Predicated region
      $region57: #{tpu_custom_call.1} parent=5 // pred_check
        %p2645 = pneg %p2644
      $region58: #{tpu_custom_call.1} parent=5 // pred_check_branch
        %2647 = sbr.rel (%p2645) target = $region60
      $region59: #{tpu_custom_call.1} parent=5 // pred_region
        %s2648 = ssub.s32 %s18, 2
        // Predicated region
        $region61: #{tpu_custom_call.1} parent=59 // pred_check
          %p2649 = pneg %p157
        $region62: #{tpu_custom_call.1} parent=59 // pred_check_branch
          %2651 = sbr.rel (%p2649) target = $region64
        $region63: #{tpu_custom_call.1} parent=59 // pred_region
          %s2652 = sand.u32 %s142, 1
          %s2653 = scalar_lea.sflag [#allocation4], %s2652
          %s2654 = sand.u32 %s142, 1
          %s2655 = smul.addr %s2654, 128
          %s2656 = scalar_lea.vmem [#allocation8], %s2655
          %2657 = dma.done %s2653, 2048
        $region64: #{tpu_custom_call.1} parent=59 // pred_fallthru
          _
      $region60: #{tpu_custom_call.1} parent=5 // pred_fallthru
        _
    $region6: #{tpu_custom_call.1} parent=1 // loop_footer
      %s22 = sadd.s32 1, %s18
    $region7: #{tpu_custom_call.1} parent=1 // loop_footer_branch
      %17 = sbr.rel target = $region3
    $region8: #{tpu_custom_call.1} parent=1 // loop_exit
      _
    %2658 = vsyncpa [#allocation3], 1
    %s2659 = scalar_lea.sflag [#allocation3], 1
    %2660 = vsyncpa %s2659, 1
    %2661 = vsyncpa [#allocation6], 1
    %2662 = vsyncpa [#allocation4], 1
    %s2663 = scalar_lea.sflag [#allocation4], 1
    %2664 = vsyncpa %s2663, 1

</llo_original>
